<compile_context>
chip_gen: v6e
topology: v6e:2x2x1
jax: 0.10.0
libtpu: 0.0.40
codegen_flags: <defaults>
</compile_context>

<pallas_src>
import functools
import math

import jax
import jax.numpy as jnp
from jax.experimental import pallas as pl
from jax.experimental.pallas import tpu as pltpu


_MAX_PACK_LANE = 4096          # cap on lcm(C, 128) for the packed fast path


def _round_up(a, b):
    return (a + b - 1) // b * b


def _vmem_capacity_bytes():
    try:
        return int(pltpu.get_tpu_info().vmem_capacity_bytes)
    except Exception:          # conservative fallback: v7x per-core VMEM (64 MiB)
        return 64 << 20


def _plan_tiles(n_rows, out_lane, in_lane, block_rows=None):
    """Rows-per-block + VMEM limit, budgeted from the chip's actual VMEM.

    Working-set accounting per buffered row (f32, lane dims pad to 128 in VMEM):
      2x output block (double buffer) + ~2x output block (in-kernel temporaries,
      e.g. the materialized MXU result) + 2x lane-padded x block (double buffer).
    """
    cap = _vmem_capacity_bytes()
    budget = min(40 << 20, cap // 2)          # ~40 MiB on v5e/v6e, ~32 MiB on v7x
    out_b = _round_up(out_lane, 128) * 4
    in_b = _round_up(max(in_lane, 1), 128) * 4
    per_row = 4 * out_b + 2 * in_b
    bm = max(8, (budget // per_row) // 8 * 8)
    # >= 2 grid steps whenever possible so v7x's two TensorCores both get work
    # (the row grid is marked "parallel"); costs only ~0.35 us on 1-TC chips.
    bm = min(bm, max(8, _round_up(pl.cdiv(n_rows, 2), 8)))
    bm = min(bm, _round_up(max(n_rows, 1), 8))
    if block_rows is not None:
        bm = int(block_rows)                  # caller override (must be a multiple of 8)
    vmem_limit = int(min(cap - (8 << 20), budget + (8 << 20)))
    return int(bm), vmem_limit


def _rbf_packed_kernel(x_ref, s_ref, c_ref, o_ref, *, scale, negate):
    # x_ref: (bm, k)     raw x values, k packed x-values per lane-dense output row
    # s_ref: (k, lane)   one-hot selection matrix, S[p, p*C + c] = 1.0
    # c_ref: (1, lane)   sqrt(|gamma|)-scaled centers, tiled k times
    # o_ref: (bm, lane)  lane % 128 == 0 -> unmasked full-lane stores
    xs = x_ref[...] * scale
    # Lane expansion on the otherwise-idle MXU: x_rep[r, p*C + c] = xs[r, p].
    # With exact 0/1 weights and HIGHEST precision the f32 expansion is
    # reconstructed (near-)exactly, and the VALU slot no longer saturates ahead
    # of the HBM writeback.
    x_rep = jnp.dot(xs, s_ref[...],
                    precision=jax.lax.Precision.HIGHEST,
                    preferred_element_type=jnp.float32)
    d = x_rep - c_ref[...]
    dd = d * d
    # (Ragged last block: rows past the array end hold garbage but are masked on
    #  the output DMA; exp on them is harmless.)
    o_ref[...] = jnp.exp(-dd) if negate else jnp.exp(dd)


def _rbf_simple_kernel(x_ref, c_ref, o_ref, *, scale, negate):
    # Fallback (C % 128 == 0, i.e. already lane-dense, or lcm(C,128) too large).
    # x_ref: (bm, 1); c_ref: (1, C) pre-scaled; o_ref: (bm, C)
    d = x_ref[...] * scale - c_ref[...]
    dd = d * d
    o_ref[...] = jnp.exp(-dd) if negate else jnp.exp(dd)


def rbf_pallas(x, centers, gamma, *, block_rows=None):
    """RBF expansion: returns (x.size, n_centers) float32, exp(-gamma*(x - c)^2)."""
    x_flat = jnp.reshape(x, (-1,)).astype(jnp.float32)
    n = int(x_flat.shape[0])
    centers = jnp.asarray(centers, jnp.float32).reshape(-1)
    n_centers = int(centers.shape[0])

    g = float(gamma)             # module hyper-parameter -> static at trace time
    scale = abs(g) ** 0.5
    negate = g >= 0.0            # exp(-(s*x - s*c)^2) == exp(-gamma*(x-c)^2) for gamma >= 0
    sc = centers * scale         # tiny wrapper-side pre-scale (C elements)

    if n == 0:
        return jnp.zeros((0, n_centers), jnp.float32)

    cost = pl.CostEstimate(flops=4 * n * n_centers,
                           transcendentals=n * n_centers,
                           bytes_accessed=4 * (n + n * n_centers + n_centers))

    lane = n_centers * 128 // math.gcd(n_centers, 128)   # lcm(C, 128)
    k = lane // n_centers
    packed = (n_centers % 128 != 0) and (lane <= _MAX_PACK_LANE)

    if packed:
        rows = pl.cdiv(n, k)
        n_pad = rows * k
        x_pad = x_flat if n_pad == n else jnp.pad(x_flat, (0, n_pad - n))
        x2d = x_pad.reshape(rows, k)
        c_row = jnp.tile(sc, k).reshape(1, lane)          # c_row[0, p*C + c] = s*centers[c]
        grp = jnp.arange(lane, dtype=jnp.int32) // n_centers
        sel = (grp[None, :] == jnp.arange(k, dtype=jnp.int32)[:, None]).astype(jnp.float32)

        bm, vmem_limit = _plan_tiles(rows, lane, k, block_rows)
        out = pl.pallas_call(
            functools.partial(_rbf_packed_kernel, scale=scale, negate=negate),
            out_shape=jax.ShapeDtypeStruct((rows, lane), jnp.float32),
            grid_spec=pltpu.PrefetchScalarGridSpec(
                num_scalar_prefetch=0,
                grid=(pl.cdiv(rows, bm),),
                in_specs=[
                    pl.BlockSpec((bm, k), lambda i: (i, 0)),       # packed x slab
                    pl.BlockSpec((k, lane), lambda i: (0, 0)),     # one-hot expansion matrix
                    pl.BlockSpec((1, lane), lambda i: (0, 0)),     # tiled, scaled centers
                ],
                # If a profile shows exposed writeback on v7x, sweep
                # pipeline_mode=pl.Buffered(3) here.
                out_specs=pl.BlockSpec((bm, lane), lambda i: (i, 0)),
            ),
            compiler_params=pltpu.CompilerParams(
                dimension_semantics=("parallel",),
                vmem_limit_bytes=vmem_limit),
            cost_estimate=cost,
        )(x2d, sel, c_row)
        # Free row-major reshape: (rows, k*C)[r, p*C + c] == (n_pad, C)[r*k + p, c].
        out = out.reshape(n_pad, n_centers)
        # Rare-tail slice (only when N % k != 0); fuses with consumers under jit.
        return out if n_pad == n else out[:n]

    # ---- General fallback: C multiple of 128 (already lane-dense) or lcm too big ----
    x2d = x_flat.reshape(n, 1)
    c_row = sc.reshape(1, n_centers)
    bm, vmem_limit = _plan_tiles(n, n_centers, 1, block_rows)
    return pl.pallas_call(
        functools.partial(_rbf_simple_kernel, scale=scale, negate=negate),
        out_shape=jax.ShapeDtypeStruct((n, n_centers), jnp.float32),
        grid_spec=pltpu.PrefetchScalarGridSpec(
            num_scalar_prefetch=0,
            grid=(pl.cdiv(n, bm),),
            in_specs=[
                pl.BlockSpec((bm, 1), lambda i: (i, 0)),
                pl.BlockSpec((1, n_centers), lambda i: (0, 0)),
            ],
            out_specs=pl.BlockSpec((bm, n_centers), lambda i: (i, 0)),
        ),
        compiler_params=pltpu.CompilerParams(
            dimension_semantics=("parallel",),
            vmem_limit_bytes=vmem_limit),
        cost_estimate=cost,
    )(x2d, c_row)


if __name__ == "__main__":
    key = jax.random.PRNGKey(0)

    def ref_rbf(xv, cv, gv):
        xc = jnp.reshape(xv, (-1, 1)).astype(jnp.float32)
        return jnp.exp(-gv * jnp.square(xc - jnp.asarray(cv, jnp.float32)[None, :]))

    # Case 1: typical module use -- C=16 centers, flattened (2,4,16,16) input.
    n_centers = 16
    centers = jnp.linspace(0.0, 10.0, n_centers, dtype=jnp.float32)
    gamma = 2.0
    x = jax.random.uniform(key, (2, 4, 16, 16), dtype=jnp.float32) * 10.0
    y = jax.block_until_ready(rbf_pallas(x, centers, gamma))
    y_ref = ref_rbf(x, centers, gamma)
    assert y.shape == (x.size, n_centers)
    # 2e-4 tolerance: covers the worst case where the f32 one-hot matmul is lowered
    # as a 2-way bf16 split (error <= ~5e-5 here); with full f32 reconstruction the
    # remaining diff is only the sqrt(gamma)-fold rounding (~1e-6).
    assert jnp.allclose(y, y_ref, atol=2e-4, rtol=2e-4), \
        float(jnp.max(jnp.abs(y - y_ref)))

    # Case 2: C does not divide 128 -> generalized packing (lane = lcm(20,128) = 640).
    centers2 = jnp.linspace(0.0, 5.0, 20, dtype=jnp.float32)
    x2 = jax.random.normal(jax.random.PRNGKey(1), (128,), dtype=jnp.float32) * 3.0
    y2 = jax.block_until_ready(rbf_pallas(x2, centers2, 0.5))
    assert y2.shape == (128, 20)
    assert jnp.allclose(y2, ref_rbf(x2, centers2, 0.5), atol=2e-4, rtol=2e-4)

    # Case 3: ragged N (N % k != 0) -> packed main body + tiny tail slice, no fallback.
    x3 = jax.random.normal(jax.random.PRNGKey(2), (100,), dtype=jnp.float32) * 4.0
    y3 = jax.block_until_ready(rbf_pallas(x3, centers, 1.3))
    assert y3.shape == (100, n_centers)
    assert jnp.allclose(y3, ref_rbf(x3, centers, 1.3), atol=2e-4, rtol=2e-4)

    # Case 4: large C that is not packable (lcm(130,128) > cap) -> simple fallback path.
    centers4 = jnp.linspace(-2.0, 2.0, 130, dtype=jnp.float32)
    x4 = jax.random.normal(jax.random.PRNGKey(3), (64,), dtype=jnp.float32)
    y4 = jax.block_until_ready(rbf_pallas(x4, centers4, 0.7))
    assert y4.shape == (64, 130)
    assert jnp.allclose(y4, ref_rbf(x4, centers4, 0.7), atol=1e-5, rtol=1e-5)

    print("KERNEL_OK")
</pallas_src>

<mosaic_0001>
module attributes {stable_mosaic.version = 11 : i64} {
  func.func @_rbf_packed_kernel(%arg0: i32, %arg1: memref<128x8xf32, #tpu.memory_space<vmem>>, %arg2: memref<8x128xf32, #tpu.memory_space<vmem>>, %arg3: memref<1x128xf32, #tpu.memory_space<vmem>>, %arg4: memref<128x128xf32, #tpu.memory_space<vmem>>) attributes {dimension_semantics = [#tpu.dimension_semantics<parallel>], iteration_bounds = array<i64: 2>, scalar_prefetch = 0 : i64, scratch_operands = 0 : i64, tpu.core_type = #tpu.core_type<tc>, window_params = [{transform_indices = @transform_0, window_bounds = array<i64: 128, 8>}, {pipeline_mode = #tpu.pipeline_mode<synchronous>, transform_indices = @transform_1, window_bounds = array<i64: 8, 128>}, {pipeline_mode = #tpu.pipeline_mode<synchronous>, transform_indices = @transform_2, window_bounds = array<i64: 1, 128>}, {transform_indices = @transform_3, window_bounds = array<i64: 128, 128>}]} {
    %c0 = arith.constant 0 : index
    %c0_0 = arith.constant 0 : index
    %0 = vector.load %arg1[%c0, %c0_0] : memref<128x8xf32, #tpu.memory_space<vmem>>, vector<128x8xf32>
    %cst = arith.constant 1.41421354 : f32
    %1 = vector.broadcast %cst : f32 to vector<128x8xf32>
    %2 = arith.mulf %0, %1 : vector<128x8xf32>
    %c0_1 = arith.constant 0 : index
    %c0_2 = arith.constant 0 : index
    %3 = vector.load %arg2[%c0_1, %c0_2] : memref<8x128xf32, #tpu.memory_space<vmem>>, vector<8x128xf32>
    %cst_3 = arith.constant dense<0.000000e+00> : vector<128x128xf32>
    %4 = tpu.matmul %2, %3, %cst_3 {dimension_numbers = #tpu.dot_dimension_numbers<[1], [0], [0], [1], [0, 0, 1, 1], [], []>, precision = #tpu.contract_precision<fp32>} : vector<128x8xf32>, vector<8x128xf32>, vector<128x128xf32> -> vector<128x128xf32>
    %c0_4 = arith.constant 0 : index
    %c0_5 = arith.constant 0 : index
    %5 = vector.load %arg3[%c0_4, %c0_5] : memref<1x128xf32, #tpu.memory_space<vmem>>, vector<1x128xf32>
    %6 = vector.broadcast %5 : vector<1x128xf32> to vector<128x128xf32>
    %7 = arith.subf %4, %6 : vector<128x128xf32>
    %8 = arith.mulf %7, %7 : vector<128x128xf32>
    %cst_6 = arith.constant 0.000000e+00 : f32
    %9 = vector.broadcast %cst_6 : f32 to vector<128x128xf32>
    %10 = arith.subf %9, %8 : vector<128x128xf32>
    %11 = math.exp %10 : vector<128x128xf32>
    %c0_7 = arith.constant 0 : index
    %c0_8 = arith.constant 0 : index
    %12 = vector.load %arg4[%c0_7, %c0_8] : memref<128x128xf32, #tpu.memory_space<vmem>>, vector<128x128xf32>
    tpu.vector_store %arg4[%c0_7, %c0_8], %11 {strides = array<i32>} : memref<128x128xf32, #tpu.memory_space<vmem>>, vector<128x128xf32>,
    return
  }
  func.func @transform_0(%arg0: i32) -> (i32, i32) {
    %c0_i32 = arith.constant 0 : i32
    %c0_i32_0 = arith.constant 0 : i32
    return %arg0, %c0_i32 : i32, i32
  }
  func.func @transform_1(%arg0: i32) -> (i32, i32) {
    %c0_i32 = arith.constant 0 : i32
    %c0_i32_0 = arith.constant 0 : i32
    %c0_i32_1 = arith.constant 0 : i32
    return %c0_i32, %c0_i32_0 : i32, i32
  }
  func.func @transform_2(%arg0: i32) -> (i32, i32) {
    %c0_i32 = arith.constant 0 : i32
    %c0_i32_0 = arith.constant 0 : i32
    %c0_i32_1 = arith.constant 0 : i32
    return %c0_i32, %c0_i32_0 : i32, i32
  }
  func.func @transform_3(%arg0: i32) -> (i32, i32) {
    %c0_i32 = arith.constant 0 : i32
    %c0_i32_0 = arith.constant 0 : i32
    return %arg0, %c0_i32 : i32, i32
  }
}

</mosaic_0001>

<llo_original>
// kernel: tpu_custom_call.1
$region0: #{tpu_custom_call.1}
  #allocation0 [shape = 'u32[]', space=smem, size = 0x4, offset = 0x4, fixed_abs, tag = 'smem constant byte address 0x4 - core index']
  #allocation1 [shape = 'u32[144,128]{1,0:T(1,128)}', space=vmem, size = 0x12000, scoped, tag = 'internal scratch']
  %s0 = inlined_call_operand.vmem [shape: f32[256,8], index: 0, kind: input, shape index: {}]
  %s1 = inlined_call_operand.vmem [shape: f32[8,128], index: 1, kind: input, shape index: {}]
  %s2 = inlined_call_operand.vmem [shape: f32[1,128], index: 2, kind: input, shape index: {}]
  %s3 = inlined_call_operand.hbm [shape: f32[256,128], index: 3, kind: output, shape index: {}]
  %s4 = sld [smem:[#allocation0]]
  $region45: #{tpu_custom_call.1} parent=0
    _
  %s6 = ssub.s32 1, %s4
  %s7 = scalar_select 0, %s6, %s4
  $region1: #{tpu_custom_call.1} parent=0
    #allocation2 [shape = 'u8[131072]{0}', space=vmem, size = 0x20000, scoped, tag = 'output window, operand 0']
    #allocation3 [shape = 's32[2]{0}', space=sflag, size = 0x8, scoped, tag = 'scoped memory for tpu_custom_call.1']
    %8 = vsyncpa [#allocation3], 0
    %s9 = scalar_lea.sflag [#allocation3], 1
    %10 = vsyncpa %s9, 0
    loop: start=0, step=1, limit=4
    $region2: #{tpu_custom_call.1} parent=1 // loop_pre_header
      _
    $region3: #{tpu_custom_call.1} parent=1 // loop_header
      %s12 = sphi 0, %s16
      %p13 = scmp.ge.s32.totalorder %s12, 4
      %s22 = sphi 0, %s24
      %s25 = sphi 0, %s22
      %s26 = sphi 0, %s25
      %s42 = sphi 0, %s26
      %s46 = sphi 0, %s46
      %s48 = sphi 0, %s46
      %s49 = sphi 0, %s48
      %s63 = sphi 0, %s49
      %s67 = sphi 0, %s67
      %s69 = sphi 0, %s67
      %s70 = sphi 0, %s69
      %s84 = sphi 0, %s70
      %s90 = sphi 0, %s92
      %s93 = sphi 0, %s90
      %s94 = sphi 0, %s93
      %s110 = sphi 0, %s94
    $region4: #{tpu_custom_call.1} parent=1 // loop_header_branch
      %15 = sbr.rel (%p13) target = $region8
    $region5: #{tpu_custom_call.1} parent=1 // loop_body
      %s17 = ssub.s32 %s12, 1
      %s18 = ssub.s32 %s12, 2
      %s19 = sadd.s32 %s12, 1
      %s20 = ssub.s32 %s12, %s19
      %p21 = scmp.eq.s32.totalorder %s20, 0
      %s23 = sadd.s32 %s22, 1
      %s24 = scalar_select %p21, %s22, %s23
      %p27 = pneg %p21
      %p28 = scmp.eq.s32.totalorder %s12, 1
      %p29 = por %p27, %p28
      %p30 = scmp.ne.s32.totalorder %s22, %s25
      %p31 = scmp.eq.s32.totalorder %s12, 0
      %p32 = por %p30, %p31
      %p33 = scmp.ne.s32.totalorder %s22, %s25
      %p34 = scmp.eq.s32.totalorder %s17, 1
      %p35 = por %p33, %p34
      %p36 = scmp.ne.s32.totalorder %s25, %s26
      %p37 = scmp.eq.s32.totalorder %s17, 0
      %p38 = por %p36, %p37
      %p39 = scmp.ne.s32.totalorder %s25, %s26
      %p40 = scmp.eq.s32.totalorder %s18, 1
      %p41 = por %p39, %p40
      %p43 = scmp.ne.s32.totalorder %s26, %s42
      %p44 = scmp.eq.s32.totalorder %s18, 0
      %p45 = por %p43, %p44
      %s47 = sadd.s32 %s46, 1
      %p50 = scmp.eq.s32.totalorder %s12, 1
      %p51 = scmp.ne.s32.totalorder %s46, %s48
      %p52 = scmp.eq.s32.totalorder %s12, 0
      %p53 = por %p51, %p52
      %p54 = scmp.ne.s32.totalorder %s46, %s48
      %p55 = scmp.eq.s32.totalorder %s17, 1
      %p56 = por %p54, %p55
      %p57 = scmp.ne.s32.totalorder %s48, %s49
      %p58 = scmp.eq.s32.totalorder %s17, 0
      %p59 = por %p57, %p58
      %p60 = scmp.ne.s32.totalorder %s48, %s49
      %p61 = scmp.eq.s32.totalorder %s18, 1
      %p62 = por %p60, %p61
      %p64 = scmp.ne.s32.totalorder %s49, %s63
      %p65 = scmp.eq.s32.totalorder %s18, 0
      %p66 = por %p64, %p65
      %s68 = sadd.s32 %s67, 1
      %p71 = scmp.eq.s32.totalorder %s12, 1
      %p72 = scmp.ne.s32.totalorder %s67, %s69
      %p73 = scmp.eq.s32.totalorder %s12, 0
      %p74 = por %p72, %p73
      %p75 = scmp.ne.s32.totalorder %s67, %s69
      %p76 = scmp.eq.s32.totalorder %s17, 1
      %p77 = por %p75, %p76
      %p78 = scmp.ne.s32.totalorder %s69, %s70
      %p79 = scmp.eq.s32.totalorder %s17, 0
      %p80 = por %p78, %p79
      %p81 = scmp.ne.s32.totalorder %s69, %s70
      %p82 = scmp.eq.s32.totalorder %s18, 1
      %p83 = por %p81, %p82
      %p85 = scmp.ne.s32.totalorder %s70, %s84
      %p86 = scmp.eq.s32.totalorder %s18, 0
      %p87 = por %p85, %p86
      %s88 = ssub.s32 %s12, %s19
      %p89 = scmp.eq.s32.totalorder %s88, 0
      %s91 = sadd.s32 %s90, 1
      %s92 = scalar_select %p89, %s90, %s91
      %p95 = pneg %p89
      %p96 = scmp.eq.s32.totalorder %s12, 1
      %p97 = por %p95, %p96
      %p98 = scmp.ne.s32.totalorder %s90, %s93
      %p99 = scmp.eq.s32.totalorder %s12, 0
      %p100 = por %p98, %p99
      %p101 = scmp.ne.s32.totalorder %s90, %s93
      %p102 = scmp.eq.s32.totalorder %s17, 1
      %p103 = por %p101, %p102
      %p104 = scmp.ne.s32.totalorder %s93, %s94
      %p105 = scmp.eq.s32.totalorder %s17, 0
      %p106 = por %p104, %p105
      %p107 = scmp.ne.s32.totalorder %s93, %s94
      %p108 = scmp.eq.s32.totalorder %s18, 1
      %p109 = por %p107, %p108
      %p111 = scmp.ne.s32.totalorder %s94, %s110
      %p112 = scmp.eq.s32.totalorder %s18, 0
      %p113 = por %p111, %p112
      %p114 = scmp.le.s32.totalorder 1, %s12
      %p115 = scmp.lt.s32.totalorder %s12, 3
      %p116 = pnand %p114, %p115
      %p117 = pneg %p116
      // Predicated region
      $region9: #{tpu_custom_call.1} parent=5 // pred_check
        _
      $region10: #{tpu_custom_call.1} parent=5 // pred_check_branch
        %119 = sbr.rel (%p116) target = $region12
      $region11: #{tpu_custom_call.1} parent=5 // pred_region
        %s120 = ssub.s32 %s12, 1
        // Predicated region
        $region13: #{tpu_custom_call.1} parent=11 // pred_check
          %p121 = pneg %p59
        $region14: #{tpu_custom_call.1} parent=11 // pred_check_branch
          %123 = sbr.rel (%p121) target = $region16
        $region15: #{tpu_custom_call.1} parent=11 // pred_region
          _
        $region16: #{tpu_custom_call.1} parent=11 // pred_fallthru
          _
        // Predicated region
        $region17: #{tpu_custom_call.1} parent=11 // pred_check
          %p124 = pneg %p80
        $region18: #{tpu_custom_call.1} parent=11 // pred_check_branch
          %126 = sbr.rel (%p124) target = $region20
        $region19: #{tpu_custom_call.1} parent=11 // pred_region
          _
        $region20: #{tpu_custom_call.1} parent=11 // pred_fallthru
          _
      $region12: #{tpu_custom_call.1} parent=5 // pred_fallthru
        _
      %p127 = scmp.lt.s32.totalorder %s12, 2
      // Predicated region
      $region21: #{tpu_custom_call.1} parent=5 // pred_check
        %p128 = pneg %p127
      $region22: #{tpu_custom_call.1} parent=5 // pred_check_branch
        %130 = sbr.rel (%p128) target = $region24
      $region23: #{tpu_custom_call.1} parent=5 // pred_region
        // Predicated region
        $region25: #{tpu_custom_call.1} parent=23 // pred_check
          %p131 = pneg %p32
        $region26: #{tpu_custom_call.1} parent=23 // pred_check_branch
          %133 = sbr.rel (%p131) target = $region28
        $region27: #{tpu_custom_call.1} parent=23 // pred_region
          %s134 = smul.u32 16, %s12
          %p135 = scmp.lt.s32.totalorder %s134, 31
          %s136 = scalar_select %p135, %s134, 31
          %s137 = smul.addr %s136, 8
          %s138 = scalar_lea.vmem %s0, %s137
          %s139 = smul.u32 16, %s12
        $region28: #{tpu_custom_call.1} parent=23 // pred_fallthru
          _
      $region24: #{tpu_custom_call.1} parent=5 // pred_fallthru
        _
      %p140 = scmp.le.s32.totalorder 1, %s12
      %p141 = scmp.lt.s32.totalorder %s12, 3
      %p142 = pnand %p140, %p141
      %p143 = pneg %p142
      // Predicated region
      $region29: #{tpu_custom_call.1} parent=5 // pred_check
        _
      $region30: #{tpu_custom_call.1} parent=5 // pred_check_branch
        %145 = sbr.rel (%p142) target = $region32
      $region31: #{tpu_custom_call.1} parent=5 // pred_region
        %s146 = ssub.s32 %s12, 1
        %s147 = smul.u32 16, %s17
        %p148 = scmp.lt.s32.totalorder %s147, 31
        %s149 = scalar_select %p148, %s147, 31
        %s150 = smul.addr %s149, 8
        %s151 = scalar_lea.vmem %s0, %s150
        %p152 = pneg %p38
        %p153 = pneg %p35
        %p154 = pneg %p59
        %p155 = pneg %p56
        %p156 = pneg %p80
        %p157 = pneg %p77
        %p158 = pneg %p106
        %p159 = pneg %p103
        %s160 = sand.u32 %s93, 1
        %s161 = scalar_lea.sflag [#allocation3], %s160
        %s162 = sand.u32 %s93, 1
        %s163 = smul.addr %s162, 128
        %s164 = scalar_lea.vmem [#allocation2], %s163
        %s165 = smul.u32 16, %s17
        %p166 = scmp.lt.s32.totalorder %s165, 31
        %s167 = scalar_select %p166, %s165, 31
        %s168 = smul.addr %s167, 8
        %s169 = scalar_lea.vmem %s0, %s168
        %s170 = smul.u32 16, %s17
        %s171 = smul.u32 16, %s17
        %v172 = vld [vmem:[%s169] sm:$0xff]
        %v173 = vld [vmem:[%s169 + $0x8] sm:$0xff]
        %v174 = vld [vmem:[%s169 + $0x10] sm:$0xff]
        %v175 = vld [vmem:[%s169 + $0x18] sm:$0xff]
        %v176 = vld [vmem:[%s169 + $0x20] sm:$0xff]
        %v177 = vld [vmem:[%s169 + $0x28] sm:$0xff]
        %v178 = vld [vmem:[%s169 + $0x30] sm:$0xff]
        %v179 = vld [vmem:[%s169 + $0x38] sm:$0xff]
        %v180 = vld [vmem:[%s169 + $0x40] sm:$0xff]
        %v181 = vld [vmem:[%s169 + $0x48] sm:$0xff]
        %v182 = vld [vmem:[%s169 + $0x50] sm:$0xff]
        %v183 = vld [vmem:[%s169 + $0x58] sm:$0xff]
        %v184 = vld [vmem:[%s169 + $0x60] sm:$0xff]
        %v185 = vld [vmem:[%s169 + $0x68] sm:$0xff]
        %v186 = vld [vmem:[%s169 + $0x70] sm:$0xff]
        %v187 = vld [vmem:[%s169 + $0x78] sm:$0xff]
        %v188 = vmul.f32 %v172, 1.4142135
        %v189 = vmul.f32 %v173, 1.4142135
        %v190 = vmul.f32 %v174, 1.4142135
        %v191 = vmul.f32 %v175, 1.4142135
        %v192 = vmul.f32 %v176, 1.4142135
        %v193 = vmul.f32 %v177, 1.4142135
        %v194 = vmul.f32 %v178, 1.4142135
        %v195 = vmul.f32 %v179, 1.4142135
        %v196 = vmul.f32 %v180, 1.4142135
        %v197 = vmul.f32 %v181, 1.4142135
        %v198 = vmul.f32 %v182, 1.4142135
        %v199 = vmul.f32 %v183, 1.4142135
        %v200 = vmul.f32 %v184, 1.4142135
        %v201 = vmul.f32 %v185, 1.4142135
        %v202 = vmul.f32 %v186, 1.4142135
        %v203 = vmul.f32 %v187, 1.4142135
        %v204 = vld [vmem:[%s1] sm:$0xff]
        %vm205 = vcmask 64512
        %v207 = vsel %vm205, %v188, 0
        %v210 = vsel %vm205, %v189, 0
        %v213 = vsel %vm205, %v190, 0
        %v216 = vsel %vm205, %v191, 0
        %v219 = vsel %vm205, %v192, 0
        %v222 = vsel %vm205, %v193, 0
        %v225 = vsel %vm205, %v194, 0
        %v228 = vsel %vm205, %v195, 0
        %v231 = vsel %vm205, %v196, 0
        %v234 = vsel %vm205, %v197, 0
        %v237 = vsel %vm205, %v198, 0
        %v240 = vsel %vm205, %v199, 0
        %v243 = vsel %vm205, %v200, 0
        %v246 = vsel %vm205, %v201, 0
        %v249 = vsel %vm205, %v202, 0
        %v252 = vsel %vm205, %v203, 0
        %254 = vmatprep.subr.mxu0 0.0
        %255 = vmatpush1.msra.mxu0 0.0
        %256 = vmatprep.subr.mxu0 0.0
        %257 = vmatpush1.msra.mxu0 0.0
        %258 = vmatprep.subr.mxu0 0.0
        %259 = vmatpush1.msra.mxu0 0.0
        %260 = vmatprep.subr.mxu0 0.0
        %261 = vmatpush1.msra.mxu0 0.0
        %262 = vmatprep.subr.mxu0 0.0
        %263 = vmatpush1.msra.mxu0 0.0
        %264 = vmatprep.subr.mxu0 0.0
        %265 = vmatpush1.msra.mxu0 0.0
        %266 = vmatprep.subr.mxu0 0.0
        %267 = vmatpush1.msra.mxu0 0.0
        %268 = vmatprep.subr.mxu0 0.0
        %269 = vmatpush1.msra.mxu0 0.0
        %270 = vmatprep.subr.mxu0 0.0
        %271 = vmatpush1.msra.mxu0 0.0
        %272 = vmatprep.subr.mxu0 0.0
        %273 = vmatpush1.msra.mxu0 0.0
        %274 = vmatprep.subr.mxu0 0.0
        %275 = vmatpush1.msra.mxu0 0.0
        %276 = vmatprep.subr.mxu0 0.0
        %277 = vmatpush1.msra.mxu0 0.0
        %278 = vmatprep.subr.mxu0 0.0
        %279 = vmatpush1.msra.mxu0 0.0
        %280 = vmatprep.subr.mxu0 0.0
        %281 = vmatpush1.msra.mxu0 0.0
        %282 = vmatprep.subr.mxu0 0.0
        %283 = vmatpush1.msra.mxu0 0.0
        %284 = vmatprep.subr.mxu0 0.0
        %v285 = vand.u32 %v204, 4294901760
        %286 = vmatpush1.msra.mxu0 %v285
        %287 = vmatprep.subr.mxu0 0.0
        %288 = vmatpush2.msra.mxu0 0.0
        %289 = vmatprep.subr.mxu0 0.0
        %290 = vmatpush2.msra.mxu0 0.0
        %291 = vmatprep.subr.mxu0 0.0
        %292 = vmatpush2.msra.mxu0 0.0
        %293 = vmatprep.subr.mxu0 0.0
        %294 = vmatpush2.msra.mxu0 0.0
        %295 = vmatprep.subr.mxu0 0.0
        %296 = vmatpush2.msra.mxu0 0.0
        %297 = vmatprep.subr.mxu0 0.0
        %298 = vmatpush2.msra.mxu0 0.0
        %299 = vmatprep.subr.mxu0 0.0
        %300 = vmatpush2.msra.mxu0 0.0
        %301 = vmatprep.subr.mxu0 0.0
        %302 = vmatpush2.msra.mxu0 0.0
        %303 = vmatprep.subr.mxu0 0.0
        %304 = vmatpush2.msra.mxu0 0.0
        %305 = vmatprep.subr.mxu0 0.0
        %306 = vmatpush2.msra.mxu0 0.0
        %307 = vmatprep.subr.mxu0 0.0
        %308 = vmatpush2.msra.mxu0 0.0
        %309 = vmatprep.subr.mxu0 0.0
        %310 = vmatpush2.msra.mxu0 0.0
        %311 = vmatprep.subr.mxu0 0.0
        %312 = vmatpush2.msra.mxu0 0.0
        %313 = vmatprep.subr.mxu0 0.0
        %314 = vmatpush2.msra.mxu0 0.0
        %315 = vmatprep.subr.mxu0 0.0
        %316 = vmatpush2.msra.mxu0 0.0
        %317 = vmatprep.subr.mxu0 0.0
        %318 = vmatpush2.msra.mxu0 0.0
        %319 = vmatprep.mubr.f32.mxu0 0.0
        %v320 = vand.u32 %v207, 4294901760
        %v321 = vsub.f32 %v207, %v320
        %v322 = vand.u32 %v321, 4294901760
        %v323 = vsub.f32 %v321, %v322
        %v324 = vand.u32 %v323, 4294901760
        %325 = vmatmul.mubr.f32.gmra.mxu0 %v324
        %v326 = vpop.f32.mrf.mxu0
        %v327 = vadd.f32 0.0, %v326
        %v328 = vpop.f32.mrf.mxu0
        %329 = vmatprep.mubr.f32.mxu0 0.0
        %v330 = vand.u32 %v210, 4294901760
        %v331 = vsub.f32 %v210, %v330
        %v332 = vand.u32 %v331, 4294901760
        %v333 = vsub.f32 %v331, %v332
        %v334 = vand.u32 %v333, 4294901760
        %335 = vmatmul.mubr.f32.gmra.mxu0 %v334
        %v336 = vpop.f32.mrf.mxu0
        %v337 = vadd.f32 0.0, %v336
        %v338 = vpop.f32.mrf.mxu0
        %339 = vmatprep.mubr.f32.mxu0 0.0
        %v340 = vand.u32 %v213, 4294901760
        %v341 = vsub.f32 %v213, %v340
        %v342 = vand.u32 %v341, 4294901760
        %v343 = vsub.f32 %v341, %v342
        %v344 = vand.u32 %v343, 4294901760
        %345 = vmatmul.mubr.f32.gmra.mxu0 %v344
        %v346 = vpop.f32.mrf.mxu0
        %v347 = vadd.f32 0.0, %v346
        %v348 = vpop.f32.mrf.mxu0
        %349 = vmatprep.mubr.f32.mxu0 0.0
        %v350 = vand.u32 %v216, 4294901760
        %v351 = vsub.f32 %v216, %v350
        %v352 = vand.u32 %v351, 4294901760
        %v353 = vsub.f32 %v351, %v352
        %v354 = vand.u32 %v353, 4294901760
        %355 = vmatmul.mubr.f32.gmra.mxu0 %v354
        %v356 = vpop.f32.mrf.mxu0
        %v357 = vadd.f32 0.0, %v356
        %v358 = vpop.f32.mrf.mxu0
        %359 = vmatprep.mubr.f32.mxu0 0.0
        %v360 = vand.u32 %v219, 4294901760
        %v361 = vsub.f32 %v219, %v360
        %v362 = vand.u32 %v361, 4294901760
        %v363 = vsub.f32 %v361, %v362
        %v364 = vand.u32 %v363, 4294901760
        %365 = vmatmul.mubr.f32.gmra.mxu0 %v364
        %v366 = vpop.f32.mrf.mxu0
        %v367 = vadd.f32 0.0, %v366
        %v368 = vpop.f32.mrf.mxu0
        %369 = vmatprep.mubr.f32.mxu0 0.0
        %v370 = vand.u32 %v222, 4294901760
        %v371 = vsub.f32 %v222, %v370
        %v372 = vand.u32 %v371, 4294901760
        %v373 = vsub.f32 %v371, %v372
        %v374 = vand.u32 %v373, 4294901760
        %375 = vmatmul.mubr.f32.gmra.mxu0 %v374
        %v376 = vpop.f32.mrf.mxu0
        %v377 = vadd.f32 0.0, %v376
        %v378 = vpop.f32.mrf.mxu0
        %379 = vmatprep.mubr.f32.mxu0 0.0
        %v380 = vand.u32 %v225, 4294901760
        %v381 = vsub.f32 %v225, %v380
        %v382 = vand.u32 %v381, 4294901760
        %v383 = vsub.f32 %v381, %v382
        %v384 = vand.u32 %v383, 4294901760
        %385 = vmatmul.mubr.f32.gmra.mxu0 %v384
        %v386 = vpop.f32.mrf.mxu0
        %v387 = vadd.f32 0.0, %v386
        %v388 = vpop.f32.mrf.mxu0
        %389 = vmatprep.mubr.f32.mxu0 0.0
        %v390 = vand.u32 %v228, 4294901760
        %v391 = vsub.f32 %v228, %v390
        %v392 = vand.u32 %v391, 4294901760
        %v393 = vsub.f32 %v391, %v392
        %v394 = vand.u32 %v393, 4294901760
        %395 = vmatmul.mubr.f32.gmra.mxu0 %v394
        %v396 = vpop.f32.mrf.mxu0
        %v397 = vadd.f32 0.0, %v396
        %v398 = vpop.f32.mrf.mxu0
        %399 = vmatprep.mubr.f32.mxu0 0.0
        %v400 = vand.u32 %v231, 4294901760
        %v401 = vsub.f32 %v231, %v400
        %v402 = vand.u32 %v401, 4294901760
        %v403 = vsub.f32 %v401, %v402
        %v404 = vand.u32 %v403, 4294901760
        %405 = vmatmul.mubr.f32.gmra.mxu0 %v404
        %v406 = vpop.f32.mrf.mxu0
        %v407 = vadd.f32 0.0, %v406
        %v408 = vpop.f32.mrf.mxu0
        %409 = vmatprep.mubr.f32.mxu0 0.0
        %v410 = vand.u32 %v234, 4294901760
        %v411 = vsub.f32 %v234, %v410
        %v412 = vand.u32 %v411, 4294901760
        %v413 = vsub.f32 %v411, %v412
        %v414 = vand.u32 %v413, 4294901760
        %415 = vmatmul.mubr.f32.gmra.mxu0 %v414
        %v416 = vpop.f32.mrf.mxu0
        %v417 = vadd.f32 0.0, %v416
        %v418 = vpop.f32.mrf.mxu0
        %419 = vmatprep.mubr.f32.mxu0 0.0
        %v420 = vand.u32 %v237, 4294901760
        %v421 = vsub.f32 %v237, %v420
        %v422 = vand.u32 %v421, 4294901760
        %v423 = vsub.f32 %v421, %v422
        %v424 = vand.u32 %v423, 4294901760
        %425 = vmatmul.mubr.f32.gmra.mxu0 %v424
        %v426 = vpop.f32.mrf.mxu0
        %v427 = vadd.f32 0.0, %v426
        %v428 = vpop.f32.mrf.mxu0
        %429 = vmatprep.mubr.f32.mxu0 0.0
        %v430 = vand.u32 %v240, 4294901760
        %v431 = vsub.f32 %v240, %v430
        %v432 = vand.u32 %v431, 4294901760
        %v433 = vsub.f32 %v431, %v432
        %v434 = vand.u32 %v433, 4294901760
        %435 = vmatmul.mubr.f32.gmra.mxu0 %v434
        %v436 = vpop.f32.mrf.mxu0
        %v437 = vadd.f32 0.0, %v436
        %v438 = vpop.f32.mrf.mxu0
        %439 = vmatprep.mubr.f32.mxu0 0.0
        %v440 = vand.u32 %v243, 4294901760
        %v441 = vsub.f32 %v243, %v440
        %v442 = vand.u32 %v441, 4294901760
        %v443 = vsub.f32 %v441, %v442
        %v444 = vand.u32 %v443, 4294901760
        %445 = vmatmul.mubr.f32.gmra.mxu0 %v444
        %v446 = vpop.f32.mrf.mxu0
        %v447 = vadd.f32 0.0, %v446
        %v448 = vpop.f32.mrf.mxu0
        %449 = vmatprep.mubr.f32.mxu0 0.0
        %v450 = vand.u32 %v246, 4294901760
        %v451 = vsub.f32 %v246, %v450
        %v452 = vand.u32 %v451, 4294901760
        %v453 = vsub.f32 %v451, %v452
        %v454 = vand.u32 %v453, 4294901760
        %455 = vmatmul.mubr.f32.gmra.mxu0 %v454
        %v456 = vpop.f32.mrf.mxu0
        %v457 = vadd.f32 0.0, %v456
        %v458 = vpop.f32.mrf.mxu0
        %459 = vmatprep.mubr.f32.mxu0 0.0
        %v460 = vand.u32 %v249, 4294901760
        %v461 = vsub.f32 %v249, %v460
        %v462 = vand.u32 %v461, 4294901760
        %v463 = vsub.f32 %v461, %v462
        %v464 = vand.u32 %v463, 4294901760
        %465 = vmatmul.mubr.f32.gmra.mxu0 %v464
        %v466 = vpop.f32.mrf.mxu0
        %v467 = vadd.f32 0.0, %v466
        %v468 = vpop.f32.mrf.mxu0
        %469 = vmatprep.mubr.f32.mxu0 0.0
        %v470 = vand.u32 %v252, 4294901760
        %v471 = vsub.f32 %v252, %v470
        %v472 = vand.u32 %v471, 4294901760
        %v473 = vsub.f32 %v471, %v472
        %v474 = vand.u32 %v473, 4294901760
        %475 = vmatmul.mubr.f32.gmra.mxu0 %v474
        %v476 = vpop.f32.mrf.mxu0
        %v477 = vadd.f32 0.0, %v476
        %v478 = vpop.f32.mrf.mxu0
        %479 = vdwg.mxu0
        %480 = vmatprep.subr.mxu0 0.0
        %481 = vmatpush1.msra.mxu0 0.0
        %482 = vmatprep.subr.mxu0 0.0
        %483 = vmatpush1.msra.mxu0 0.0
        %484 = vmatprep.subr.mxu0 0.0
        %485 = vmatpush1.msra.mxu0 0.0
        %486 = vmatprep.subr.mxu0 0.0
        %487 = vmatpush1.msra.mxu0 0.0
        %488 = vmatprep.subr.mxu0 0.0
        %489 = vmatpush1.msra.mxu0 0.0
        %490 = vmatprep.subr.mxu0 0.0
        %491 = vmatpush1.msra.mxu0 0.0
        %492 = vmatprep.subr.mxu0 0.0
        %493 = vmatpush1.msra.mxu0 0.0
        %494 = vmatprep.subr.mxu0 0.0
        %495 = vmatpush1.msra.mxu0 0.0
        %496 = vmatprep.subr.mxu0 0.0
        %497 = vmatpush1.msra.mxu0 0.0
        %498 = vmatprep.subr.mxu0 0.0
        %499 = vmatpush1.msra.mxu0 0.0
        %500 = vmatprep.subr.mxu0 0.0
        %501 = vmatpush1.msra.mxu0 0.0
        %502 = vmatprep.subr.mxu0 0.0
        %503 = vmatpush1.msra.mxu0 0.0
        %504 = vmatprep.subr.mxu0 0.0
        %505 = vmatpush1.msra.mxu0 0.0
        %506 = vmatprep.subr.mxu0 0.0
        %507 = vmatpush1.msra.mxu0 0.0
        %508 = vmatprep.subr.mxu0 0.0
        %509 = vmatpush1.msra.mxu0 0.0
        %510 = vmatprep.subr.mxu0 0.0
        %v511 = vand.u32 %v204, 4294901760
        %v512 = vsub.f32 %v204, %v511
        %v513 = vand.u32 %v512, 4294901760
        %v514 = vsub.f32 %v512, %v513
        %v515 = vand.u32 %v514, 4294901760
        %516 = vmatpush1.msra.mxu0 %v515
        %517 = vmatprep.subr.mxu0 0.0
        %518 = vmatpush2.msra.mxu0 0.0
        %519 = vmatprep.subr.mxu0 0.0
        %520 = vmatpush2.msra.mxu0 0.0
        %521 = vmatprep.subr.mxu0 0.0
        %522 = vmatpush2.msra.mxu0 0.0
        %523 = vmatprep.subr.mxu0 0.0
        %524 = vmatpush2.msra.mxu0 0.0
        %525 = vmatprep.subr.mxu0 0.0
        %526 = vmatpush2.msra.mxu0 0.0
        %527 = vmatprep.subr.mxu0 0.0
        %528 = vmatpush2.msra.mxu0 0.0
        %529 = vmatprep.subr.mxu0 0.0
        %530 = vmatpush2.msra.mxu0 0.0
        %531 = vmatprep.subr.mxu0 0.0
        %532 = vmatpush2.msra.mxu0 0.0
        %533 = vmatprep.subr.mxu0 0.0
        %534 = vmatpush2.msra.mxu0 0.0
        %535 = vmatprep.subr.mxu0 0.0
        %536 = vmatpush2.msra.mxu0 0.0
        %537 = vmatprep.subr.mxu0 0.0
        %538 = vmatpush2.msra.mxu0 0.0
        %539 = vmatprep.subr.mxu0 0.0
        %540 = vmatpush2.msra.mxu0 0.0
        %541 = vmatprep.subr.mxu0 0.0
        %542 = vmatpush2.msra.mxu0 0.0
        %543 = vmatprep.subr.mxu0 0.0
        %544 = vmatpush2.msra.mxu0 0.0
        %545 = vmatprep.subr.mxu0 0.0
        %546 = vmatpush2.msra.mxu0 0.0
        %547 = vmatprep.subr.mxu0 0.0
        %548 = vmatpush2.msra.mxu0 0.0
        %549 = vmatprep.mubr.f32.mxu0 0.0
        %v550 = vand.u32 %v207, 4294901760
        %551 = vmatmul.mubr.f32.gmra.mxu0 %v550
        %v552 = vpop.f32.mrf.mxu0
        %v553 = vadd.f32 %v327, %v552
        %v554 = vpop.f32.mrf.mxu0
        %555 = vmatprep.mubr.f32.mxu0 0.0
        %v556 = vand.u32 %v210, 4294901760
        %557 = vmatmul.mubr.f32.gmra.mxu0 %v556
        %v558 = vpop.f32.mrf.mxu0
        %v559 = vadd.f32 %v337, %v558
        %v560 = vpop.f32.mrf.mxu0
        %561 = vmatprep.mubr.f32.mxu0 0.0
        %v562 = vand.u32 %v213, 4294901760
        %563 = vmatmul.mubr.f32.gmra.mxu0 %v562
        %v564 = vpop.f32.mrf.mxu0
        %v565 = vadd.f32 %v347, %v564
        %v566 = vpop.f32.mrf.mxu0
        %567 = vmatprep.mubr.f32.mxu0 0.0
        %v568 = vand.u32 %v216, 4294901760
        %569 = vmatmul.mubr.f32.gmra.mxu0 %v568
        %v570 = vpop.f32.mrf.mxu0
        %v571 = vadd.f32 %v357, %v570
        %v572 = vpop.f32.mrf.mxu0
        %573 = vmatprep.mubr.f32.mxu0 0.0
        %v574 = vand.u32 %v219, 4294901760
        %575 = vmatmul.mubr.f32.gmra.mxu0 %v574
        %v576 = vpop.f32.mrf.mxu0
        %v577 = vadd.f32 %v367, %v576
        %v578 = vpop.f32.mrf.mxu0
        %579 = vmatprep.mubr.f32.mxu0 0.0
        %v580 = vand.u32 %v222, 4294901760
        %581 = vmatmul.mubr.f32.gmra.mxu0 %v580
        %v582 = vpop.f32.mrf.mxu0
        %v583 = vadd.f32 %v377, %v582
        %v584 = vpop.f32.mrf.mxu0
        %585 = vmatprep.mubr.f32.mxu0 0.0
        %v586 = vand.u32 %v225, 4294901760
        %587 = vmatmul.mubr.f32.gmra.mxu0 %v586
        %v588 = vpop.f32.mrf.mxu0
        %v589 = vadd.f32 %v387, %v588
        %v590 = vpop.f32.mrf.mxu0
        %591 = vmatprep.mubr.f32.mxu0 0.0
        %v592 = vand.u32 %v228, 4294901760
        %593 = vmatmul.mubr.f32.gmra.mxu0 %v592
        %v594 = vpop.f32.mrf.mxu0
        %v595 = vadd.f32 %v397, %v594
        %v596 = vpop.f32.mrf.mxu0
        %597 = vmatprep.mubr.f32.mxu0 0.0
        %v598 = vand.u32 %v231, 4294901760
        %599 = vmatmul.mubr.f32.gmra.mxu0 %v598
        %v600 = vpop.f32.mrf.mxu0
        %v601 = vadd.f32 %v407, %v600
        %v602 = vpop.f32.mrf.mxu0
        %603 = vmatprep.mubr.f32.mxu0 0.0
        %v604 = vand.u32 %v234, 4294901760
        %605 = vmatmul.mubr.f32.gmra.mxu0 %v604
        %v606 = vpop.f32.mrf.mxu0
        %v607 = vadd.f32 %v417, %v606
        %v608 = vpop.f32.mrf.mxu0
        %609 = vmatprep.mubr.f32.mxu0 0.0
        %v610 = vand.u32 %v237, 4294901760
        %611 = vmatmul.mubr.f32.gmra.mxu0 %v610
        %v612 = vpop.f32.mrf.mxu0
        %v613 = vadd.f32 %v427, %v612
        %v614 = vpop.f32.mrf.mxu0
        %615 = vmatprep.mubr.f32.mxu0 0.0
        %v616 = vand.u32 %v240, 4294901760
        %617 = vmatmul.mubr.f32.gmra.mxu0 %v616
        %v618 = vpop.f32.mrf.mxu0
        %v619 = vadd.f32 %v437, %v618
        %v620 = vpop.f32.mrf.mxu0
        %621 = vmatprep.mubr.f32.mxu0 0.0
        %v622 = vand.u32 %v243, 4294901760
        %623 = vmatmul.mubr.f32.gmra.mxu0 %v622
        %v624 = vpop.f32.mrf.mxu0
        %v625 = vadd.f32 %v447, %v624
        %v626 = vpop.f32.mrf.mxu0
        %627 = vmatprep.mubr.f32.mxu0 0.0
        %v628 = vand.u32 %v246, 4294901760
        %629 = vmatmul.mubr.f32.gmra.mxu0 %v628
        %v630 = vpop.f32.mrf.mxu0
        %v631 = vadd.f32 %v457, %v630
        %v632 = vpop.f32.mrf.mxu0
        %633 = vmatprep.mubr.f32.mxu0 0.0
        %v634 = vand.u32 %v249, 4294901760
        %635 = vmatmul.mubr.f32.gmra.mxu0 %v634
        %v636 = vpop.f32.mrf.mxu0
        %v637 = vadd.f32 %v467, %v636
        %v638 = vpop.f32.mrf.mxu0
        %639 = vmatprep.mubr.f32.mxu0 0.0
        %v640 = vand.u32 %v252, 4294901760
        %641 = vmatmul.mubr.f32.gmra.mxu0 %v640
        %v642 = vpop.f32.mrf.mxu0
        %v643 = vadd.f32 %v477, %v642
        %v644 = vpop.f32.mrf.mxu0
        %645 = vdwg.mxu0
        %646 = vmatprep.subr.mxu0 0.0
        %647 = vmatpush1.msra.mxu0 0.0
        %648 = vmatprep.subr.mxu0 0.0
        %649 = vmatpush1.msra.mxu0 0.0
        %650 = vmatprep.subr.mxu0 0.0
        %651 = vmatpush1.msra.mxu0 0.0
        %652 = vmatprep.subr.mxu0 0.0
        %653 = vmatpush1.msra.mxu0 0.0
        %654 = vmatprep.subr.mxu0 0.0
        %655 = vmatpush1.msra.mxu0 0.0
        %656 = vmatprep.subr.mxu0 0.0
        %657 = vmatpush1.msra.mxu0 0.0
        %658 = vmatprep.subr.mxu0 0.0
        %659 = vmatpush1.msra.mxu0 0.0
        %660 = vmatprep.subr.mxu0 0.0
        %661 = vmatpush1.msra.mxu0 0.0
        %662 = vmatprep.subr.mxu0 0.0
        %663 = vmatpush1.msra.mxu0 0.0
        %664 = vmatprep.subr.mxu0 0.0
        %665 = vmatpush1.msra.mxu0 0.0
        %666 = vmatprep.subr.mxu0 0.0
        %667 = vmatpush1.msra.mxu0 0.0
        %668 = vmatprep.subr.mxu0 0.0
        %669 = vmatpush1.msra.mxu0 0.0
        %670 = vmatprep.subr.mxu0 0.0
        %671 = vmatpush1.msra.mxu0 0.0
        %672 = vmatprep.subr.mxu0 0.0
        %673 = vmatpush1.msra.mxu0 0.0
        %674 = vmatprep.subr.mxu0 0.0
        %675 = vmatpush1.msra.mxu0 0.0
        %676 = vmatprep.subr.mxu0 0.0
        %v677 = vand.u32 %v204, 4294901760
        %v678 = vsub.f32 %v204, %v677
        %679 = vmatpush1.msra.mxu0 %v678
        %680 = vmatprep.subr.mxu0 0.0
        %681 = vmatpush2.msra.mxu0 0.0
        %682 = vmatprep.subr.mxu0 0.0
        %683 = vmatpush2.msra.mxu0 0.0
        %684 = vmatprep.subr.mxu0 0.0
        %685 = vmatpush2.msra.mxu0 0.0
        %686 = vmatprep.subr.mxu0 0.0
        %687 = vmatpush2.msra.mxu0 0.0
        %688 = vmatprep.subr.mxu0 0.0
        %689 = vmatpush2.msra.mxu0 0.0
        %690 = vmatprep.subr.mxu0 0.0
        %691 = vmatpush2.msra.mxu0 0.0
        %692 = vmatprep.subr.mxu0 0.0
        %693 = vmatpush2.msra.mxu0 0.0
        %694 = vmatprep.subr.mxu0 0.0
        %695 = vmatpush2.msra.mxu0 0.0
        %696 = vmatprep.subr.mxu0 0.0
        %697 = vmatpush2.msra.mxu0 0.0
        %698 = vmatprep.subr.mxu0 0.0
        %699 = vmatpush2.msra.mxu0 0.0
        %700 = vmatprep.subr.mxu0 0.0
        %701 = vmatpush2.msra.mxu0 0.0
        %702 = vmatprep.subr.mxu0 0.0
        %703 = vmatpush2.msra.mxu0 0.0
        %704 = vmatprep.subr.mxu0 0.0
        %705 = vmatpush2.msra.mxu0 0.0
        %706 = vmatprep.subr.mxu0 0.0
        %707 = vmatpush2.msra.mxu0 0.0
        %708 = vmatprep.subr.mxu0 0.0
        %709 = vmatpush2.msra.mxu0 0.0
        %710 = vmatprep.subr.mxu0 0.0
        %711 = vmatpush2.msra.mxu0 0.0
        %712 = vmatprep.mubr.f32.mxu0 0.0
        %v713 = vand.u32 %v207, 4294901760
        %v714 = vsub.f32 %v207, %v713
        %715 = vmatmul.mubr.f32.gmra.mxu0 %v714
        %v716 = vpop.f32.mrf.mxu0
        %v717 = vadd.f32 %v553, %v716
        %v718 = vpop.f32.mrf.mxu0
        %719 = vmatprep.mubr.f32.mxu0 0.0
        %v720 = vand.u32 %v210, 4294901760
        %v721 = vsub.f32 %v210, %v720
        %722 = vmatmul.mubr.f32.gmra.mxu0 %v721
        %v723 = vpop.f32.mrf.mxu0
        %v724 = vadd.f32 %v559, %v723
        %v725 = vpop.f32.mrf.mxu0
        %726 = vmatprep.mubr.f32.mxu0 0.0
        %v727 = vand.u32 %v213, 4294901760
        %v728 = vsub.f32 %v213, %v727
        %729 = vmatmul.mubr.f32.gmra.mxu0 %v728
        %v730 = vpop.f32.mrf.mxu0
        %v731 = vadd.f32 %v565, %v730
        %v732 = vpop.f32.mrf.mxu0
        %733 = vmatprep.mubr.f32.mxu0 0.0
        %v734 = vand.u32 %v216, 4294901760
        %v735 = vsub.f32 %v216, %v734
        %736 = vmatmul.mubr.f32.gmra.mxu0 %v735
        %v737 = vpop.f32.mrf.mxu0
        %v738 = vadd.f32 %v571, %v737
        %v739 = vpop.f32.mrf.mxu0
        %740 = vmatprep.mubr.f32.mxu0 0.0
        %v741 = vand.u32 %v219, 4294901760
        %v742 = vsub.f32 %v219, %v741
        %743 = vmatmul.mubr.f32.gmra.mxu0 %v742
        %v744 = vpop.f32.mrf.mxu0
        %v745 = vadd.f32 %v577, %v744
        %v746 = vpop.f32.mrf.mxu0
        %747 = vmatprep.mubr.f32.mxu0 0.0
        %v748 = vand.u32 %v222, 4294901760
        %v749 = vsub.f32 %v222, %v748
        %750 = vmatmul.mubr.f32.gmra.mxu0 %v749
        %v751 = vpop.f32.mrf.mxu0
        %v752 = vadd.f32 %v583, %v751
        %v753 = vpop.f32.mrf.mxu0
        %754 = vmatprep.mubr.f32.mxu0 0.0
        %v755 = vand.u32 %v225, 4294901760
        %v756 = vsub.f32 %v225, %v755
        %757 = vmatmul.mubr.f32.gmra.mxu0 %v756
        %v758 = vpop.f32.mrf.mxu0
        %v759 = vadd.f32 %v589, %v758
        %v760 = vpop.f32.mrf.mxu0
        %761 = vmatprep.mubr.f32.mxu0 0.0
        %v762 = vand.u32 %v228, 4294901760
        %v763 = vsub.f32 %v228, %v762
        %764 = vmatmul.mubr.f32.gmra.mxu0 %v763
        %v765 = vpop.f32.mrf.mxu0
        %v766 = vadd.f32 %v595, %v765
        %v767 = vpop.f32.mrf.mxu0
        %768 = vmatprep.mubr.f32.mxu0 0.0
        %v769 = vand.u32 %v231, 4294901760
        %v770 = vsub.f32 %v231, %v769
        %771 = vmatmul.mubr.f32.gmra.mxu0 %v770
        %v772 = vpop.f32.mrf.mxu0
        %v773 = vadd.f32 %v601, %v772
        %v774 = vpop.f32.mrf.mxu0
        %775 = vmatprep.mubr.f32.mxu0 0.0
        %v776 = vand.u32 %v234, 4294901760
        %v777 = vsub.f32 %v234, %v776
        %778 = vmatmul.mubr.f32.gmra.mxu0 %v777
        %v779 = vpop.f32.mrf.mxu0
        %v780 = vadd.f32 %v607, %v779
        %v781 = vpop.f32.mrf.mxu0
        %782 = vmatprep.mubr.f32.mxu0 0.0
        %v783 = vand.u32 %v237, 4294901760
        %v784 = vsub.f32 %v237, %v783
        %785 = vmatmul.mubr.f32.gmra.mxu0 %v784
        %v786 = vpop.f32.mrf.mxu0
        %v787 = vadd.f32 %v613, %v786
        %v788 = vpop.f32.mrf.mxu0
        %789 = vmatprep.mubr.f32.mxu0 0.0
        %v790 = vand.u32 %v240, 4294901760
        %v791 = vsub.f32 %v240, %v790
        %792 = vmatmul.mubr.f32.gmra.mxu0 %v791
        %v793 = vpop.f32.mrf.mxu0
        %v794 = vadd.f32 %v619, %v793
        %v795 = vpop.f32.mrf.mxu0
        %796 = vmatprep.mubr.f32.mxu0 0.0
        %v797 = vand.u32 %v243, 4294901760
        %v798 = vsub.f32 %v243, %v797
        %799 = vmatmul.mubr.f32.gmra.mxu0 %v798
        %v800 = vpop.f32.mrf.mxu0
        %v801 = vadd.f32 %v625, %v800
        %v802 = vpop.f32.mrf.mxu0
        %803 = vmatprep.mubr.f32.mxu0 0.0
        %v804 = vand.u32 %v246, 4294901760
        %v805 = vsub.f32 %v246, %v804
        %806 = vmatmul.mubr.f32.gmra.mxu0 %v805
        %v807 = vpop.f32.mrf.mxu0
        %v808 = vadd.f32 %v631, %v807
        %v809 = vpop.f32.mrf.mxu0
        %810 = vmatprep.mubr.f32.mxu0 0.0
        %v811 = vand.u32 %v249, 4294901760
        %v812 = vsub.f32 %v249, %v811
        %813 = vmatmul.mubr.f32.gmra.mxu0 %v812
        %v814 = vpop.f32.mrf.mxu0
        %v815 = vadd.f32 %v637, %v814
        %v816 = vpop.f32.mrf.mxu0
        %817 = vmatprep.mubr.f32.mxu0 0.0
        %v818 = vand.u32 %v252, 4294901760
        %v819 = vsub.f32 %v252, %v818
        %820 = vmatmul.mubr.f32.gmra.mxu0 %v819
        %v821 = vpop.f32.mrf.mxu0
        %v822 = vadd.f32 %v643, %v821
        %v823 = vpop.f32.mrf.mxu0
        %824 = vdwg.mxu0
        %825 = vmatprep.subr.mxu0 0.0
        %826 = vmatpush1.msra.mxu0 0.0
        %827 = vmatprep.subr.mxu0 0.0
        %828 = vmatpush1.msra.mxu0 0.0
        %829 = vmatprep.subr.mxu0 0.0
        %830 = vmatpush1.msra.mxu0 0.0
        %831 = vmatprep.subr.mxu0 0.0
        %832 = vmatpush1.msra.mxu0 0.0
        %833 = vmatprep.subr.mxu0 0.0
        %834 = vmatpush1.msra.mxu0 0.0
        %835 = vmatprep.subr.mxu0 0.0
        %836 = vmatpush1.msra.mxu0 0.0
        %837 = vmatprep.subr.mxu0 0.0
        %838 = vmatpush1.msra.mxu0 0.0
        %839 = vmatprep.subr.mxu0 0.0
        %840 = vmatpush1.msra.mxu0 0.0
        %841 = vmatprep.subr.mxu0 0.0
        %842 = vmatpush1.msra.mxu0 0.0
        %843 = vmatprep.subr.mxu0 0.0
        %844 = vmatpush1.msra.mxu0 0.0
        %845 = vmatprep.subr.mxu0 0.0
        %846 = vmatpush1.msra.mxu0 0.0
        %847 = vmatprep.subr.mxu0 0.0
        %848 = vmatpush1.msra.mxu0 0.0
        %849 = vmatprep.subr.mxu0 0.0
        %850 = vmatpush1.msra.mxu0 0.0
        %851 = vmatprep.subr.mxu0 0.0
        %852 = vmatpush1.msra.mxu0 0.0
        %853 = vmatprep.subr.mxu0 0.0
        %854 = vmatpush1.msra.mxu0 0.0
        %855 = vmatprep.subr.mxu0 0.0
        %v856 = vand.u32 %v204, 4294901760
        %857 = vmatpush1.msra.mxu0 %v856
        %858 = vmatprep.subr.mxu0 0.0
        %859 = vmatpush2.msra.mxu0 0.0
        %860 = vmatprep.subr.mxu0 0.0
        %861 = vmatpush2.msra.mxu0 0.0
        %862 = vmatprep.subr.mxu0 0.0
        %863 = vmatpush2.msra.mxu0 0.0
        %864 = vmatprep.subr.mxu0 0.0
        %865 = vmatpush2.msra.mxu0 0.0
        %866 = vmatprep.subr.mxu0 0.0
        %867 = vmatpush2.msra.mxu0 0.0
        %868 = vmatprep.subr.mxu0 0.0
        %869 = vmatpush2.msra.mxu0 0.0
        %870 = vmatprep.subr.mxu0 0.0
        %871 = vmatpush2.msra.mxu0 0.0
        %872 = vmatprep.subr.mxu0 0.0
        %873 = vmatpush2.msra.mxu0 0.0
        %874 = vmatprep.subr.mxu0 0.0
        %875 = vmatpush2.msra.mxu0 0.0
        %876 = vmatprep.subr.mxu0 0.0
        %877 = vmatpush2.msra.mxu0 0.0
        %878 = vmatprep.subr.mxu0 0.0
        %879 = vmatpush2.msra.mxu0 0.0
        %880 = vmatprep.subr.mxu0 0.0
        %881 = vmatpush2.msra.mxu0 0.0
        %882 = vmatprep.subr.mxu0 0.0
        %883 = vmatpush2.msra.mxu0 0.0
        %884 = vmatprep.subr.mxu0 0.0
        %885 = vmatpush2.msra.mxu0 0.0
        %886 = vmatprep.subr.mxu0 0.0
        %887 = vmatpush2.msra.mxu0 0.0
        %888 = vmatprep.subr.mxu0 0.0
        %889 = vmatpush2.msra.mxu0 0.0
        %890 = vmatprep.mubr.f32.mxu0 0.0
        %v891 = vand.u32 %v207, 4294901760
        %v892 = vsub.f32 %v207, %v891
        %v893 = vand.u32 %v892, 4294901760
        %894 = vmatmul.mubr.f32.gmra.mxu0 %v893
        %v895 = vpop.f32.mrf.mxu0
        %v896 = vadd.f32 %v717, %v895
        %v897 = vpop.f32.mrf.mxu0
        %898 = vmatprep.mubr.f32.mxu0 0.0
        %v899 = vand.u32 %v210, 4294901760
        %v900 = vsub.f32 %v210, %v899
        %v901 = vand.u32 %v900, 4294901760
        %902 = vmatmul.mubr.f32.gmra.mxu0 %v901
        %v903 = vpop.f32.mrf.mxu0
        %v904 = vadd.f32 %v724, %v903
        %v905 = vpop.f32.mrf.mxu0
        %906 = vmatprep.mubr.f32.mxu0 0.0
        %v907 = vand.u32 %v213, 4294901760
        %v908 = vsub.f32 %v213, %v907
        %v909 = vand.u32 %v908, 4294901760
        %910 = vmatmul.mubr.f32.gmra.mxu0 %v909
        %v911 = vpop.f32.mrf.mxu0
        %v912 = vadd.f32 %v731, %v911
        %v913 = vpop.f32.mrf.mxu0
        %914 = vmatprep.mubr.f32.mxu0 0.0
        %v915 = vand.u32 %v216, 4294901760
        %v916 = vsub.f32 %v216, %v915
        %v917 = vand.u32 %v916, 4294901760
        %918 = vmatmul.mubr.f32.gmra.mxu0 %v917
        %v919 = vpop.f32.mrf.mxu0
        %v920 = vadd.f32 %v738, %v919
        %v921 = vpop.f32.mrf.mxu0
        %922 = vmatprep.mubr.f32.mxu0 0.0
        %v923 = vand.u32 %v219, 4294901760
        %v924 = vsub.f32 %v219, %v923
        %v925 = vand.u32 %v924, 4294901760
        %926 = vmatmul.mubr.f32.gmra.mxu0 %v925
        %v927 = vpop.f32.mrf.mxu0
        %v928 = vadd.f32 %v745, %v927
        %v929 = vpop.f32.mrf.mxu0
        %930 = vmatprep.mubr.f32.mxu0 0.0
        %v931 = vand.u32 %v222, 4294901760
        %v932 = vsub.f32 %v222, %v931
        %v933 = vand.u32 %v932, 4294901760
        %934 = vmatmul.mubr.f32.gmra.mxu0 %v933
        %v935 = vpop.f32.mrf.mxu0
        %v936 = vadd.f32 %v752, %v935
        %v937 = vpop.f32.mrf.mxu0
        %938 = vmatprep.mubr.f32.mxu0 0.0
        %v939 = vand.u32 %v225, 4294901760
        %v940 = vsub.f32 %v225, %v939
        %v941 = vand.u32 %v940, 4294901760
        %942 = vmatmul.mubr.f32.gmra.mxu0 %v941
        %v943 = vpop.f32.mrf.mxu0
        %v944 = vadd.f32 %v759, %v943
        %v945 = vpop.f32.mrf.mxu0
        %946 = vmatprep.mubr.f32.mxu0 0.0
        %v947 = vand.u32 %v228, 4294901760
        %v948 = vsub.f32 %v228, %v947
        %v949 = vand.u32 %v948, 4294901760
        %950 = vmatmul.mubr.f32.gmra.mxu0 %v949
        %v951 = vpop.f32.mrf.mxu0
        %v952 = vadd.f32 %v766, %v951
        %v953 = vpop.f32.mrf.mxu0
        %954 = vmatprep.mubr.f32.mxu0 0.0
        %v955 = vand.u32 %v231, 4294901760
        %v956 = vsub.f32 %v231, %v955
        %v957 = vand.u32 %v956, 4294901760
        %958 = vmatmul.mubr.f32.gmra.mxu0 %v957
        %v959 = vpop.f32.mrf.mxu0
        %v960 = vadd.f32 %v773, %v959
        %v961 = vpop.f32.mrf.mxu0
        %962 = vmatprep.mubr.f32.mxu0 0.0
        %v963 = vand.u32 %v234, 4294901760
        %v964 = vsub.f32 %v234, %v963
        %v965 = vand.u32 %v964, 4294901760
        %966 = vmatmul.mubr.f32.gmra.mxu0 %v965
        %v967 = vpop.f32.mrf.mxu0
        %v968 = vadd.f32 %v780, %v967
        %v969 = vpop.f32.mrf.mxu0
        %970 = vmatprep.mubr.f32.mxu0 0.0
        %v971 = vand.u32 %v237, 4294901760
        %v972 = vsub.f32 %v237, %v971
        %v973 = vand.u32 %v972, 4294901760
        %974 = vmatmul.mubr.f32.gmra.mxu0 %v973
        %v975 = vpop.f32.mrf.mxu0
        %v976 = vadd.f32 %v787, %v975
        %v977 = vpop.f32.mrf.mxu0
        %978 = vmatprep.mubr.f32.mxu0 0.0
        %v979 = vand.u32 %v240, 4294901760
        %v980 = vsub.f32 %v240, %v979
        %v981 = vand.u32 %v980, 4294901760
        %982 = vmatmul.mubr.f32.gmra.mxu0 %v981
        %v983 = vpop.f32.mrf.mxu0
        %v984 = vadd.f32 %v794, %v983
        %v985 = vpop.f32.mrf.mxu0
        %986 = vmatprep.mubr.f32.mxu0 0.0
        %v987 = vand.u32 %v243, 4294901760
        %v988 = vsub.f32 %v243, %v987
        %v989 = vand.u32 %v988, 4294901760
        %990 = vmatmul.mubr.f32.gmra.mxu0 %v989
        %v991 = vpop.f32.mrf.mxu0
        %v992 = vadd.f32 %v801, %v991
        %v993 = vpop.f32.mrf.mxu0
        %994 = vmatprep.mubr.f32.mxu0 0.0
        %v995 = vand.u32 %v246, 4294901760
        %v996 = vsub.f32 %v246, %v995
        %v997 = vand.u32 %v996, 4294901760
        %998 = vmatmul.mubr.f32.gmra.mxu0 %v997
        %v999 = vpop.f32.mrf.mxu0
        %v1000 = vadd.f32 %v808, %v999
        %v1001 = vpop.f32.mrf.mxu0
        %1002 = vmatprep.mubr.f32.mxu0 0.0
        %v1003 = vand.u32 %v249, 4294901760
        %v1004 = vsub.f32 %v249, %v1003
        %v1005 = vand.u32 %v1004, 4294901760
        %1006 = vmatmul.mubr.f32.gmra.mxu0 %v1005
        %v1007 = vpop.f32.mrf.mxu0
        %v1008 = vadd.f32 %v815, %v1007
        %v1009 = vpop.f32.mrf.mxu0
        %1010 = vmatprep.mubr.f32.mxu0 0.0
        %v1011 = vand.u32 %v252, 4294901760
        %v1012 = vsub.f32 %v252, %v1011
        %v1013 = vand.u32 %v1012, 4294901760
        %1014 = vmatmul.mubr.f32.gmra.mxu0 %v1013
        %v1015 = vpop.f32.mrf.mxu0
        %v1016 = vadd.f32 %v822, %v1015
        %v1017 = vpop.f32.mrf.mxu0
        %1018 = vdwg.mxu0
        %1019 = vmatprep.subr.mxu0 0.0
        %1020 = vmatpush1.msra.mxu0 0.0
        %1021 = vmatprep.subr.mxu0 0.0
        %1022 = vmatpush1.msra.mxu0 0.0
        %1023 = vmatprep.subr.mxu0 0.0
        %1024 = vmatpush1.msra.mxu0 0.0
        %1025 = vmatprep.subr.mxu0 0.0
        %1026 = vmatpush1.msra.mxu0 0.0
        %1027 = vmatprep.subr.mxu0 0.0
        %1028 = vmatpush1.msra.mxu0 0.0
        %1029 = vmatprep.subr.mxu0 0.0
        %1030 = vmatpush1.msra.mxu0 0.0
        %1031 = vmatprep.subr.mxu0 0.0
        %1032 = vmatpush1.msra.mxu0 0.0
        %1033 = vmatprep.subr.mxu0 0.0
        %1034 = vmatpush1.msra.mxu0 0.0
        %1035 = vmatprep.subr.mxu0 0.0
        %1036 = vmatpush1.msra.mxu0 0.0
        %1037 = vmatprep.subr.mxu0 0.0
        %1038 = vmatpush1.msra.mxu0 0.0
        %1039 = vmatprep.subr.mxu0 0.0
        %1040 = vmatpush1.msra.mxu0 0.0
        %1041 = vmatprep.subr.mxu0 0.0
        %1042 = vmatpush1.msra.mxu0 0.0
        %1043 = vmatprep.subr.mxu0 0.0
        %1044 = vmatpush1.msra.mxu0 0.0
        %1045 = vmatprep.subr.mxu0 0.0
        %1046 = vmatpush1.msra.mxu0 0.0
        %1047 = vmatprep.subr.mxu0 0.0
        %1048 = vmatpush1.msra.mxu0 0.0
        %1049 = vmatprep.subr.mxu0 0.0
        %v1050 = vand.u32 %v204, 4294901760
        %v1051 = vsub.f32 %v204, %v1050
        %v1052 = vand.u32 %v1051, 4294901760
        %1053 = vmatpush1.msra.mxu0 %v1052
        %1054 = vmatprep.subr.mxu0 0.0
        %1055 = vmatpush2.msra.mxu0 0.0
        %1056 = vmatprep.subr.mxu0 0.0
        %1057 = vmatpush2.msra.mxu0 0.0
        %1058 = vmatprep.subr.mxu0 0.0
        %1059 = vmatpush2.msra.mxu0 0.0
        %1060 = vmatprep.subr.mxu0 0.0
        %1061 = vmatpush2.msra.mxu0 0.0
        %1062 = vmatprep.subr.mxu0 0.0
        %1063 = vmatpush2.msra.mxu0 0.0
        %1064 = vmatprep.subr.mxu0 0.0
        %1065 = vmatpush2.msra.mxu0 0.0
        %1066 = vmatprep.subr.mxu0 0.0
        %1067 = vmatpush2.msra.mxu0 0.0
        %1068 = vmatprep.subr.mxu0 0.0
        %1069 = vmatpush2.msra.mxu0 0.0
        %1070 = vmatprep.subr.mxu0 0.0
        %1071 = vmatpush2.msra.mxu0 0.0
        %1072 = vmatprep.subr.mxu0 0.0
        %1073 = vmatpush2.msra.mxu0 0.0
        %1074 = vmatprep.subr.mxu0 0.0
        %1075 = vmatpush2.msra.mxu0 0.0
        %1076 = vmatprep.subr.mxu0 0.0
        %1077 = vmatpush2.msra.mxu0 0.0
        %1078 = vmatprep.subr.mxu0 0.0
        %1079 = vmatpush2.msra.mxu0 0.0
        %1080 = vmatprep.subr.mxu0 0.0
        %1081 = vmatpush2.msra.mxu0 0.0
        %1082 = vmatprep.subr.mxu0 0.0
        %1083 = vmatpush2.msra.mxu0 0.0
        %1084 = vmatprep.subr.mxu0 0.0
        %1085 = vmatpush2.msra.mxu0 0.0
        %1086 = vmatprep.mubr.f32.mxu0 0.0
        %v1087 = vand.u32 %v207, 4294901760
        %1088 = vmatmul.mubr.f32.gmra.mxu0 %v1087
        %v1089 = vpop.f32.mrf.mxu0
        %v1090 = vadd.f32 %v896, %v1089
        %v1091 = vpop.f32.mrf.mxu0
        %1092 = vmatprep.mubr.f32.mxu0 0.0
        %v1093 = vand.u32 %v210, 4294901760
        %1094 = vmatmul.mubr.f32.gmra.mxu0 %v1093
        %v1095 = vpop.f32.mrf.mxu0
        %v1096 = vadd.f32 %v904, %v1095
        %v1097 = vpop.f32.mrf.mxu0
        %1098 = vmatprep.mubr.f32.mxu0 0.0
        %v1099 = vand.u32 %v213, 4294901760
        %1100 = vmatmul.mubr.f32.gmra.mxu0 %v1099
        %v1101 = vpop.f32.mrf.mxu0
        %v1102 = vadd.f32 %v912, %v1101
        %v1103 = vpop.f32.mrf.mxu0
        %1104 = vmatprep.mubr.f32.mxu0 0.0
        %v1105 = vand.u32 %v216, 4294901760
        %1106 = vmatmul.mubr.f32.gmra.mxu0 %v1105
        %v1107 = vpop.f32.mrf.mxu0
        %v1108 = vadd.f32 %v920, %v1107
        %v1109 = vpop.f32.mrf.mxu0
        %1110 = vmatprep.mubr.f32.mxu0 0.0
        %v1111 = vand.u32 %v219, 4294901760
        %1112 = vmatmul.mubr.f32.gmra.mxu0 %v1111
        %v1113 = vpop.f32.mrf.mxu0
        %v1114 = vadd.f32 %v928, %v1113
        %v1115 = vpop.f32.mrf.mxu0
        %1116 = vmatprep.mubr.f32.mxu0 0.0
        %v1117 = vand.u32 %v222, 4294901760
        %1118 = vmatmul.mubr.f32.gmra.mxu0 %v1117
        %v1119 = vpop.f32.mrf.mxu0
        %v1120 = vadd.f32 %v936, %v1119
        %v1121 = vpop.f32.mrf.mxu0
        %1122 = vmatprep.mubr.f32.mxu0 0.0
        %v1123 = vand.u32 %v225, 4294901760
        %1124 = vmatmul.mubr.f32.gmra.mxu0 %v1123
        %v1125 = vpop.f32.mrf.mxu0
        %v1126 = vadd.f32 %v944, %v1125
        %v1127 = vpop.f32.mrf.mxu0
        %1128 = vmatprep.mubr.f32.mxu0 0.0
        %v1129 = vand.u32 %v228, 4294901760
        %1130 = vmatmul.mubr.f32.gmra.mxu0 %v1129
        %v1131 = vpop.f32.mrf.mxu0
        %v1132 = vadd.f32 %v952, %v1131
        %v1133 = vpop.f32.mrf.mxu0
        %1134 = vmatprep.mubr.f32.mxu0 0.0
        %v1135 = vand.u32 %v231, 4294901760
        %1136 = vmatmul.mubr.f32.gmra.mxu0 %v1135
        %v1137 = vpop.f32.mrf.mxu0
        %v1138 = vadd.f32 %v960, %v1137
        %v1139 = vpop.f32.mrf.mxu0
        %1140 = vmatprep.mubr.f32.mxu0 0.0
        %v1141 = vand.u32 %v234, 4294901760
        %1142 = vmatmul.mubr.f32.gmra.mxu0 %v1141
        %v1143 = vpop.f32.mrf.mxu0
        %v1144 = vadd.f32 %v968, %v1143
        %v1145 = vpop.f32.mrf.mxu0
        %1146 = vmatprep.mubr.f32.mxu0 0.0
        %v1147 = vand.u32 %v237, 4294901760
        %1148 = vmatmul.mubr.f32.gmra.mxu0 %v1147
        %v1149 = vpop.f32.mrf.mxu0
        %v1150 = vadd.f32 %v976, %v1149
        %v1151 = vpop.f32.mrf.mxu0
        %1152 = vmatprep.mubr.f32.mxu0 0.0
        %v1153 = vand.u32 %v240, 4294901760
        %1154 = vmatmul.mubr.f32.gmra.mxu0 %v1153
        %v1155 = vpop.f32.mrf.mxu0
        %v1156 = vadd.f32 %v984, %v1155
        %v1157 = vpop.f32.mrf.mxu0
        %1158 = vmatprep.mubr.f32.mxu0 0.0
        %v1159 = vand.u32 %v243, 4294901760
        %1160 = vmatmul.mubr.f32.gmra.mxu0 %v1159
        %v1161 = vpop.f32.mrf.mxu0
        %v1162 = vadd.f32 %v992, %v1161
        %v1163 = vpop.f32.mrf.mxu0
        %1164 = vmatprep.mubr.f32.mxu0 0.0
        %v1165 = vand.u32 %v246, 4294901760
        %1166 = vmatmul.mubr.f32.gmra.mxu0 %v1165
        %v1167 = vpop.f32.mrf.mxu0
        %v1168 = vadd.f32 %v1000, %v1167
        %v1169 = vpop.f32.mrf.mxu0
        %1170 = vmatprep.mubr.f32.mxu0 0.0
        %v1171 = vand.u32 %v249, 4294901760
        %1172 = vmatmul.mubr.f32.gmra.mxu0 %v1171
        %v1173 = vpop.f32.mrf.mxu0
        %v1174 = vadd.f32 %v1008, %v1173
        %v1175 = vpop.f32.mrf.mxu0
        %1176 = vmatprep.mubr.f32.mxu0 0.0
        %v1177 = vand.u32 %v252, 4294901760
        %1178 = vmatmul.mubr.f32.gmra.mxu0 %v1177
        %v1179 = vpop.f32.mrf.mxu0
        %v1180 = vadd.f32 %v1016, %v1179
        %v1181 = vpop.f32.mrf.mxu0
        %1182 = vdwg.mxu0
        %1183 = vmatprep.subr.mxu0 0.0
        %1184 = vmatpush1.msra.mxu0 0.0
        %1185 = vmatprep.subr.mxu0 0.0
        %1186 = vmatpush1.msra.mxu0 0.0
        %1187 = vmatprep.subr.mxu0 0.0
        %1188 = vmatpush1.msra.mxu0 0.0
        %1189 = vmatprep.subr.mxu0 0.0
        %1190 = vmatpush1.msra.mxu0 0.0
        %1191 = vmatprep.subr.mxu0 0.0
        %1192 = vmatpush1.msra.mxu0 0.0
        %1193 = vmatprep.subr.mxu0 0.0
        %1194 = vmatpush1.msra.mxu0 0.0
        %1195 = vmatprep.subr.mxu0 0.0
        %1196 = vmatpush1.msra.mxu0 0.0
        %1197 = vmatprep.subr.mxu0 0.0
        %1198 = vmatpush1.msra.mxu0 0.0
        %1199 = vmatprep.subr.mxu0 0.0
        %1200 = vmatpush1.msra.mxu0 0.0
        %1201 = vmatprep.subr.mxu0 0.0
        %1202 = vmatpush1.msra.mxu0 0.0
        %1203 = vmatprep.subr.mxu0 0.0
        %1204 = vmatpush1.msra.mxu0 0.0
        %1205 = vmatprep.subr.mxu0 0.0
        %1206 = vmatpush1.msra.mxu0 0.0
        %1207 = vmatprep.subr.mxu0 0.0
        %1208 = vmatpush1.msra.mxu0 0.0
        %1209 = vmatprep.subr.mxu0 0.0
        %1210 = vmatpush1.msra.mxu0 0.0
        %1211 = vmatprep.subr.mxu0 0.0
        %1212 = vmatpush1.msra.mxu0 0.0
        %1213 = vmatprep.subr.mxu0 0.0
        %v1214 = vand.u32 %v204, 4294901760
        %1215 = vmatpush1.msra.mxu0 %v1214
        %1216 = vmatprep.subr.mxu0 0.0
        %1217 = vmatpush2.msra.mxu0 0.0
        %1218 = vmatprep.subr.mxu0 0.0
        %1219 = vmatpush2.msra.mxu0 0.0
        %1220 = vmatprep.subr.mxu0 0.0
        %1221 = vmatpush2.msra.mxu0 0.0
        %1222 = vmatprep.subr.mxu0 0.0
        %1223 = vmatpush2.msra.mxu0 0.0
        %1224 = vmatprep.subr.mxu0 0.0
        %1225 = vmatpush2.msra.mxu0 0.0
        %1226 = vmatprep.subr.mxu0 0.0
        %1227 = vmatpush2.msra.mxu0 0.0
        %1228 = vmatprep.subr.mxu0 0.0
        %1229 = vmatpush2.msra.mxu0 0.0
        %1230 = vmatprep.subr.mxu0 0.0
        %1231 = vmatpush2.msra.mxu0 0.0
        %1232 = vmatprep.subr.mxu0 0.0
        %1233 = vmatpush2.msra.mxu0 0.0
        %1234 = vmatprep.subr.mxu0 0.0
        %1235 = vmatpush2.msra.mxu0 0.0
        %1236 = vmatprep.subr.mxu0 0.0
        %1237 = vmatpush2.msra.mxu0 0.0
        %1238 = vmatprep.subr.mxu0 0.0
        %1239 = vmatpush2.msra.mxu0 0.0
        %1240 = vmatprep.subr.mxu0 0.0
        %1241 = vmatpush2.msra.mxu0 0.0
        %1242 = vmatprep.subr.mxu0 0.0
        %1243 = vmatpush2.msra.mxu0 0.0
        %1244 = vmatprep.subr.mxu0 0.0
        %1245 = vmatpush2.msra.mxu0 0.0
        %1246 = vmatprep.subr.mxu0 0.0
        %1247 = vmatpush2.msra.mxu0 0.0
        %1248 = vmatprep.mubr.f32.mxu0 0.0
        %v1249 = vand.u32 %v207, 4294901760
        %1250 = vmatmul.mubr.f32.gmra.mxu0 %v1249
        %v1251 = vpop.f32.mrf.mxu0
        %v1252 = vadd.f32 %v1090, %v1251
        %v1253 = vpop.f32.mrf.mxu0
        %1254 = vmatprep.mubr.f32.mxu0 0.0
        %v1255 = vand.u32 %v210, 4294901760
        %1256 = vmatmul.mubr.f32.gmra.mxu0 %v1255
        %v1257 = vpop.f32.mrf.mxu0
        %v1258 = vadd.f32 %v1096, %v1257
        %v1259 = vpop.f32.mrf.mxu0
        %1260 = vmatprep.mubr.f32.mxu0 0.0
        %v1261 = vand.u32 %v213, 4294901760
        %1262 = vmatmul.mubr.f32.gmra.mxu0 %v1261
        %v1263 = vpop.f32.mrf.mxu0
        %v1264 = vadd.f32 %v1102, %v1263
        %v1265 = vpop.f32.mrf.mxu0
        %1266 = vmatprep.mubr.f32.mxu0 0.0
        %v1267 = vand.u32 %v216, 4294901760
        %1268 = vmatmul.mubr.f32.gmra.mxu0 %v1267
        %v1269 = vpop.f32.mrf.mxu0
        %v1270 = vadd.f32 %v1108, %v1269
        %v1271 = vpop.f32.mrf.mxu0
        %1272 = vmatprep.mubr.f32.mxu0 0.0
        %v1273 = vand.u32 %v219, 4294901760
        %1274 = vmatmul.mubr.f32.gmra.mxu0 %v1273
        %v1275 = vpop.f32.mrf.mxu0
        %v1276 = vadd.f32 %v1114, %v1275
        %v1277 = vpop.f32.mrf.mxu0
        %1278 = vmatprep.mubr.f32.mxu0 0.0
        %v1279 = vand.u32 %v222, 4294901760
        %1280 = vmatmul.mubr.f32.gmra.mxu0 %v1279
        %v1281 = vpop.f32.mrf.mxu0
        %v1282 = vadd.f32 %v1120, %v1281
        %v1283 = vpop.f32.mrf.mxu0
        %1284 = vmatprep.mubr.f32.mxu0 0.0
        %v1285 = vand.u32 %v225, 4294901760
        %1286 = vmatmul.mubr.f32.gmra.mxu0 %v1285
        %v1287 = vpop.f32.mrf.mxu0
        %v1288 = vadd.f32 %v1126, %v1287
        %v1289 = vpop.f32.mrf.mxu0
        %1290 = vmatprep.mubr.f32.mxu0 0.0
        %v1291 = vand.u32 %v228, 4294901760
        %1292 = vmatmul.mubr.f32.gmra.mxu0 %v1291
        %v1293 = vpop.f32.mrf.mxu0
        %v1294 = vadd.f32 %v1132, %v1293
        %v1295 = vpop.f32.mrf.mxu0
        %1296 = vmatprep.mubr.f32.mxu0 0.0
        %v1297 = vand.u32 %v231, 4294901760
        %1298 = vmatmul.mubr.f32.gmra.mxu0 %v1297
        %v1299 = vpop.f32.mrf.mxu0
        %v1300 = vadd.f32 %v1138, %v1299
        %v1301 = vpop.f32.mrf.mxu0
        %1302 = vmatprep.mubr.f32.mxu0 0.0
        %v1303 = vand.u32 %v234, 4294901760
        %1304 = vmatmul.mubr.f32.gmra.mxu0 %v1303
        %v1305 = vpop.f32.mrf.mxu0
        %v1306 = vadd.f32 %v1144, %v1305
        %v1307 = vpop.f32.mrf.mxu0
        %1308 = vmatprep.mubr.f32.mxu0 0.0
        %v1309 = vand.u32 %v237, 4294901760
        %1310 = vmatmul.mubr.f32.gmra.mxu0 %v1309
        %v1311 = vpop.f32.mrf.mxu0
        %v1312 = vadd.f32 %v1150, %v1311
        %v1313 = vpop.f32.mrf.mxu0
        %1314 = vmatprep.mubr.f32.mxu0 0.0
        %v1315 = vand.u32 %v240, 4294901760
        %1316 = vmatmul.mubr.f32.gmra.mxu0 %v1315
        %v1317 = vpop.f32.mrf.mxu0
        %v1318 = vadd.f32 %v1156, %v1317
        %v1319 = vpop.f32.mrf.mxu0
        %1320 = vmatprep.mubr.f32.mxu0 0.0
        %v1321 = vand.u32 %v243, 4294901760
        %1322 = vmatmul.mubr.f32.gmra.mxu0 %v1321
        %v1323 = vpop.f32.mrf.mxu0
        %v1324 = vadd.f32 %v1162, %v1323
        %v1325 = vpop.f32.mrf.mxu0
        %1326 = vmatprep.mubr.f32.mxu0 0.0
        %v1327 = vand.u32 %v246, 4294901760
        %1328 = vmatmul.mubr.f32.gmra.mxu0 %v1327
        %v1329 = vpop.f32.mrf.mxu0
        %v1330 = vadd.f32 %v1168, %v1329
        %v1331 = vpop.f32.mrf.mxu0
        %1332 = vmatprep.mubr.f32.mxu0 0.0
        %v1333 = vand.u32 %v249, 4294901760
        %1334 = vmatmul.mubr.f32.gmra.mxu0 %v1333
        %v1335 = vpop.f32.mrf.mxu0
        %v1336 = vadd.f32 %v1174, %v1335
        %v1337 = vpop.f32.mrf.mxu0
        %1338 = vmatprep.mubr.f32.mxu0 0.0
        %v1339 = vand.u32 %v252, 4294901760
        %1340 = vmatmul.mubr.f32.gmra.mxu0 %v1339
        %v1341 = vpop.f32.mrf.mxu0
        %v1342 = vadd.f32 %v1180, %v1341
        %v1343 = vpop.f32.mrf.mxu0
        %1344 = vdwg.mxu0
        %v1345 = vld [vmem:[%s2] sm:$0x1]
        %v1347 = vlaneseq
        %v1348 = vshrl.u32 %v1347, 7
        %v1349 = vsub.s32 0, %v1348
        %v1350 = vrot.slane %v1345, %v1349
        %v1352 = vsub.f32 %v1252, %v1350
        %v1353 = vsub.f32 %v1258, %v1350
        %v1354 = vsub.f32 %v1264, %v1350
        %v1355 = vsub.f32 %v1270, %v1350
        %v1356 = vsub.f32 %v1276, %v1350
        %v1357 = vsub.f32 %v1282, %v1350
        %v1358 = vsub.f32 %v1288, %v1350
        %v1359 = vsub.f32 %v1294, %v1350
        %v1360 = vsub.f32 %v1300, %v1350
        %v1361 = vsub.f32 %v1306, %v1350
        %v1362 = vsub.f32 %v1312, %v1350
        %v1363 = vsub.f32 %v1318, %v1350
        %v1364 = vsub.f32 %v1324, %v1350
        %v1365 = vsub.f32 %v1330, %v1350
        %v1366 = vsub.f32 %v1336, %v1350
        %v1367 = vsub.f32 %v1342, %v1350
        %v1368 = vmul.f32 %v1352, %v1352
        %v1369 = vmul.f32 %v1353, %v1353
        %v1370 = vmul.f32 %v1354, %v1354
        %v1371 = vmul.f32 %v1355, %v1355
        %v1372 = vmul.f32 %v1356, %v1356
        %v1373 = vmul.f32 %v1357, %v1357
        %v1374 = vmul.f32 %v1358, %v1358
        %v1375 = vmul.f32 %v1359, %v1359
        %v1376 = vmul.f32 %v1360, %v1360
        %v1377 = vmul.f32 %v1361, %v1361
        %v1378 = vmul.f32 %v1362, %v1362
        %v1379 = vmul.f32 %v1363, %v1363
        %v1380 = vmul.f32 %v1364, %v1364
        %v1381 = vmul.f32 %v1365, %v1365
        %v1382 = vmul.f32 %v1366, %v1366
        %v1383 = vmul.f32 %v1367, %v1367
        %v1384 = vsub.f32 0.0, %v1368
        %v1385 = vsub.f32 0.0, %v1369
        %v1386 = vsub.f32 0.0, %v1370
        %v1387 = vsub.f32 0.0, %v1371
        %v1388 = vsub.f32 0.0, %v1372
        %v1389 = vsub.f32 0.0, %v1373
        %v1390 = vsub.f32 0.0, %v1374
        %v1391 = vsub.f32 0.0, %v1375
        %v1392 = vsub.f32 0.0, %v1376
        %v1393 = vsub.f32 0.0, %v1377
        %v1394 = vsub.f32 0.0, %v1378
        %v1395 = vsub.f32 0.0, %v1379
        %v1396 = vsub.f32 0.0, %v1380
        %v1397 = vsub.f32 0.0, %v1381
        %v1398 = vsub.f32 0.0, %v1382
        %v1399 = vsub.f32 0.0, %v1383
        %v1400 = vmul.f32 %v1384, 1.442695
        %v1401 = vpow.pop %v1400
        %v1402 = vmul.f32 %v1385, 1.442695
        %v1403 = vpow.pop %v1402
        %v1404 = vmul.f32 %v1386, 1.442695
        %v1405 = vpow.pop %v1404
        %v1406 = vmul.f32 %v1387, 1.442695
        %v1407 = vpow.pop %v1406
        %v1408 = vmul.f32 %v1388, 1.442695
        %v1409 = vpow.pop %v1408
        %v1410 = vmul.f32 %v1389, 1.442695
        %v1411 = vpow.pop %v1410
        %v1412 = vmul.f32 %v1390, 1.442695
        %v1413 = vpow.pop %v1412
        %v1414 = vmul.f32 %v1391, 1.442695
        %v1415 = vpow.pop %v1414
        %v1416 = vmul.f32 %v1392, 1.442695
        %v1417 = vpow.pop %v1416
        %v1418 = vmul.f32 %v1393, 1.442695
        %v1419 = vpow.pop %v1418
        %v1420 = vmul.f32 %v1394, 1.442695
        %v1421 = vpow.pop %v1420
        %v1422 = vmul.f32 %v1395, 1.442695
        %v1423 = vpow.pop %v1422
        %v1424 = vmul.f32 %v1396, 1.442695
        %v1425 = vpow.pop %v1424
        %v1426 = vmul.f32 %v1397, 1.442695
        %v1427 = vpow.pop %v1426
        %v1428 = vmul.f32 %v1398, 1.442695
        %v1429 = vpow.pop %v1428
        %v1430 = vmul.f32 %v1399, 1.442695
        %v1431 = vpow.pop %v1430
        %1432 = vst [vmem:[%s164] sm:$0xff] %v1401
        %1433 = vst [vmem:[%s164 + $0x8] sm:$0xff] %v1403
        %1434 = vst [vmem:[%s164 + $0x10] sm:$0xff] %v1405
        %1435 = vst [vmem:[%s164 + $0x18] sm:$0xff] %v1407
        %1436 = vst [vmem:[%s164 + $0x20] sm:$0xff] %v1409
        %1437 = vst [vmem:[%s164 + $0x28] sm:$0xff] %v1411
        %1438 = vst [vmem:[%s164 + $0x30] sm:$0xff] %v1413
        %1439 = vst [vmem:[%s164 + $0x38] sm:$0xff] %v1415
        %1440 = vst [vmem:[%s164 + $0x40] sm:$0xff] %v1417
        %1441 = vst [vmem:[%s164 + $0x48] sm:$0xff] %v1419
        %1442 = vst [vmem:[%s164 + $0x50] sm:$0xff] %v1421
        %1443 = vst [vmem:[%s164 + $0x58] sm:$0xff] %v1423
        %1444 = vst [vmem:[%s164 + $0x60] sm:$0xff] %v1425
        %1445 = vst [vmem:[%s164 + $0x68] sm:$0xff] %v1427
        %1446 = vst [vmem:[%s164 + $0x70] sm:$0xff] %v1429
        %1447 = vst [vmem:[%s164 + $0x78] sm:$0xff] %v1431
        %s1448 = sand.u32 %s93, 1
        %s1449 = scalar_lea.sflag [#allocation3], %s1448
        %s1450 = sand.u32 %s93, 1
        %s1451 = smul.addr %s1450, 128
        %s1452 = scalar_lea.vmem [#allocation2], %s1451
        // Predicated region
        $region33: #{tpu_custom_call.1} parent=31 // pred_check
          %p1453 = pneg %p103
        $region34: #{tpu_custom_call.1} parent=31 // pred_check_branch
          %1455 = sbr.rel (%p1453) target = $region36
        $region35: #{tpu_custom_call.1} parent=31 // pred_region
          %s1456 = smul.u32 16, %s17
          %s1458 = ssub.s32 2048, 2048
          %1459 = vsyncadd %s1449, %s1458
          %s1460 = smul.addr %s1456, 128
          %s1461 = scalar_lea.hbm %s3, %s1460
          %s1462 = sshll.u32 %s1452, 4
          %s1463 = int_to_ptr.vmem [resolvable:$true] %s1462
          %1468 = dma.vmem_to_hbm [thread:$0]  %s1463, 2048, %s1461, %s1449, 128, 128, 8
        $region36: #{tpu_custom_call.1} parent=31 // pred_fallthru
          _
      $region32: #{tpu_custom_call.1} parent=5 // pred_fallthru
        _
      %p1469 = scmp.le.s32.totalorder 2, %s12
      // Predicated region
      $region37: #{tpu_custom_call.1} parent=5 // pred_check
        %p1470 = pneg %p1469
      $region38: #{tpu_custom_call.1} parent=5 // pred_check_branch
        %1472 = sbr.rel (%p1470) target = $region40
      $region39: #{tpu_custom_call.1} parent=5 // pred_region
        %s1473 = ssub.s32 %s12, 2
        // Predicated region
        $region41: #{tpu_custom_call.1} parent=39 // pred_check
          %p1474 = pneg %p109
        $region42: #{tpu_custom_call.1} parent=39 // pred_check_branch
          %1476 = sbr.rel (%p1474) target = $region44
        $region43: #{tpu_custom_call.1} parent=39 // pred_region
          %s1477 = sand.u32 %s94, 1
          %s1478 = scalar_lea.sflag [#allocation3], %s1477
          %s1479 = sand.u32 %s94, 1
          %s1480 = smul.addr %s1479, 128
          %s1481 = scalar_lea.vmem [#allocation2], %s1480
          %1482 = dma.done %s1478, 2048
        $region44: #{tpu_custom_call.1} parent=39 // pred_fallthru
          _
      $region40: #{tpu_custom_call.1} parent=5 // pred_fallthru
        _
    $region6: #{tpu_custom_call.1} parent=1 // loop_footer
      %s16 = sadd.s32 1, %s12
    $region7: #{tpu_custom_call.1} parent=1 // loop_footer_branch
      %11 = sbr.rel target = $region3
    $region8: #{tpu_custom_call.1} parent=1 // loop_exit
      _
    %1483 = vsyncpa [#allocation3], 1
    %s1484 = scalar_lea.sflag [#allocation3], 1
    %1485 = vsyncpa %s1484, 1

</llo_original>
